<compile_context>
chip_gen: v6e
topology: v6e:2x2x1
jax: 0.10.0
libtpu: 0.0.40
codegen_flags: <defaults>
</compile_context>

<pallas_src>
import functools

import jax
import jax.numpy as jnp
from jax.experimental import pallas as pl
from jax.experimental.pallas import tpu as pltpu


def _round_up(x, m):
    return (x + m - 1) // m * m


def _gated_conv_kernel(x_ref, w_ref, b_ref, o_ref, *, kh, kw, wp, l_out, c_out):
    """One batch image.

    x_ref : (C_in, L_pad)            flattened spatially-padded image (lanes = flat HW)
    w_ref : (kh*kw, 2*C_out, C_in)   per-offset fused (conv || mask_conv) weights
    b_ref : (2*C_out, 1)             fused bias (f32)
    o_ref : (C_out, l_out)           gated output, "wide" columns (l_out = H_out * Wp)
    """
    acc = jnp.zeros((2 * c_out, l_out), jnp.float32)
    # Unrolled loop over kernel offsets: each offset is a contiguous lane-dim
    # window of the flattened padded image -> shifted matmul, accumulated in f32.
    for ki in range(kh):
        for kj in range(kw):
            off = ki * wp + kj
            x_win = x_ref[:, off:off + l_out]                 # (C_in, l_out)
            w_t = w_ref[ki * kw + kj]                         # (2*C_out, C_in)
            acc = acc + jnp.dot(w_t, x_win,
                                preferred_element_type=jnp.float32)
    acc = acc + b_ref[...]                                    # bias, broadcast over lanes
    y = acc[:c_out, :]
    m = acc[c_out:, :]
    # f32 elementwise epilogue (v5e-friendly).
    # TODO(synk): if VALU-bound after mem fixes, use pl.reciprocal(1+exp(-m), approx=True).
    o_ref[...] = (y * jax.nn.sigmoid(m)).astype(o_ref.dtype)


@functools.partial(jax.jit, static_argnames=("padding", "compute_dtype"))
def gated_conv2d(x, w_conv, b_conv, w_mask, b_mask, *, padding=1,
                 compute_dtype=None):
    """x: (N, C_in, H, W) NCHW; weights: (C_out, C_in, kh, kw) OIHW; biases: (C_out,).

    compute_dtype: optional MXU operand dtype (e.g. jnp.bfloat16 on v6e/v7x);
    accumulation, bias and gating stay f32.  Output keeps x.dtype.
    """
    n, c_in, h, w = x.shape
    c_out, _, kh, kw = w_conv.shape
    p = padding
    # TODO(synk): stride>1 / dilation>1 / groups>1 not implemented (module defaults only).

    hp, wp = h + 2 * p, w + 2 * p
    h_out = h + 2 * p - kh + 1
    w_out = w + 2 * p - kw + 1
    l_out = h_out * wp                       # wide output columns (j >= w_out sliced off later)
    l_need = hp * wp + (kw - 1)              # max flat index touched by shifted windows
    l_pad = _round_up(l_need, 128)           # lane-align the flattened input

    # ---- glue (plain JAX, ~1x input traffic): pad + flatten, fuse weights/bias ----
    xp = jnp.pad(x, ((0, 0), (0, 0), (p, p), (p, p)))
    x_flat = xp.reshape(n, c_in, hp * wp)
    x_flat = jnp.pad(x_flat, ((0, 0), (0, 0), (0, l_pad - hp * wp)))

    w_cat = jnp.concatenate([w_conv, w_mask], axis=0)          # (2*C_out, C_in, kh, kw)
    w_stack = w_cat.transpose(2, 3, 0, 1).reshape(kh * kw, 2 * c_out, c_in)
    b_cat = jnp.concatenate([b_conv, b_mask]).reshape(2 * c_out, 1).astype(jnp.float32)

    if compute_dtype is not None:
        x_flat = x_flat.astype(compute_dtype)
        w_stack = w_stack.astype(compute_dtype)

    kernel = functools.partial(_gated_conv_kernel, kh=kh, kw=kw, wp=wp,
                               l_out=l_out, c_out=c_out)

    # ---- hot path: one grid step per batch image (VMEM per step is tiny here;
    #      for production C_in/H/W re-budget against 32 MiB scoped / 64 MiB v7x) ----
    out_wide = pl.pallas_call(
        kernel,
        out_shape=jax.ShapeDtypeStruct((n, c_out, l_out), x.dtype),
        grid_spec=pltpu.PrefetchScalarGridSpec(
            num_scalar_prefetch=0,
            grid=(n,),
            in_specs=[
                pl.BlockSpec((None, c_in, l_pad), lambda i: (i, 0, 0)),        # image
                pl.BlockSpec((kh * kw, 2 * c_out, c_in), lambda i: (0, 0, 0)),  # fused W
                pl.BlockSpec((2 * c_out, 1), lambda i: (0, 0)),                 # fused bias
            ],
            out_specs=pl.BlockSpec((None, c_out, l_out), lambda i: (i, 0, 0)),
        ),
        compiler_params=pltpu.CompilerParams(
            dimension_semantics=("parallel",)),
    )(x_flat, w_stack, b_cat)

    # ---- glue: drop the garbage "wide" columns; result is already NCHW ----
    out = out_wide.reshape(n, c_out, h_out, wp)[:, :, :, :w_out]
    return out


def _reference(x, w_conv, b_conv, w_mask, b_mask, padding=1):
    """Pure-JAX reference (lax conv) matching PyTorch NCHW conv semantics."""
    dn = jax.lax.conv_dimension_numbers(x.shape, w_conv.shape,
                                        ("NCHW", "OIHW", "NCHW"))
    conv = lambda wgt: jax.lax.conv_general_dilated(
        x, wgt, window_strides=(1, 1), padding=[(padding, padding)] * 2,
        dimension_numbers=dn)
    y = conv(w_conv) + b_conv[None, :, None, None]
    m = conv(w_mask) + b_mask[None, :, None, None]
    return y * jax.nn.sigmoid(m)


if __name__ == "__main__":
    # GatedConv2d(in_channels=4, out_channels=8, kernel_size=3, stride=1, padding=1)
    N, C_IN, C_OUT, H, W, KS = 2, 4, 8, 16, 16, 3

    key = jax.random.PRNGKey(0)
    k_x, k_w1, k_b1, k_w2, k_b2 = jax.random.split(key, 5)
    x = jax.random.normal(k_x, (N, C_IN, H, W), dtype=jnp.float32)
    w_conv = jax.random.normal(k_w1, (C_OUT, C_IN, KS, KS), jnp.float32) * 0.1
    b_conv = jax.random.normal(k_b1, (C_OUT,), jnp.float32) * 0.1
    w_mask = jax.random.normal(k_w2, (C_OUT, C_IN, KS, KS), jnp.float32) * 0.1
    b_mask = jax.random.normal(k_b2, (C_OUT,), jnp.float32) * 0.1

    ref = _reference(x, w_conv, b_conv, w_mask, b_mask, padding=1)

    # f32 path (tight tolerance)
    out = gated_conv2d(x, w_conv, b_conv, w_mask, b_mask, padding=1)
    out = jax.block_until_ready(out)
    assert out.shape == (N, C_OUT, H, W), out.shape
    assert jnp.allclose(out, ref, atol=1e-4, rtol=1e-4), "f32 mismatch vs reference"

    # bf16 MXU-operand path (v6e/v7x recommendation), f32 accumulation + epilogue.
    out_bf16 = gated_conv2d(x, w_conv, b_conv, w_mask, b_mask, padding=1,
                            compute_dtype=jnp.bfloat16)
    out_bf16 = jax.block_until_ready(out_bf16)
    assert out_bf16.shape == (N, C_OUT, H, W), out_bf16.shape
    assert jnp.allclose(out_bf16, ref, atol=5e-2, rtol=5e-2), "bf16 mismatch vs reference"

    print("KERNEL_OK")
</pallas_src>

<mosaic_0001>
module attributes {stable_mosaic.version = 11 : i64} {
  func.func @_gated_conv_kernel(%arg0: i32, %arg1: memref<1x4x384xf32, #tpu.memory_space<vmem>>, %arg2: memref<9x16x4xf32, #tpu.memory_space<vmem>>, %arg3: memref<16x1xf32, #tpu.memory_space<vmem>>, %arg4: memref<1x8x288xf32, #tpu.memory_space<vmem>>) attributes {dimension_semantics = [#tpu.dimension_semantics<parallel>], iteration_bounds = array<i64: 2>, scalar_prefetch = 0 : i64, scratch_operands = 0 : i64, tpu.core_type = #tpu.core_type<tc>, window_params = [{transform_indices = @transform_0, window_bounds = array<i64: 1, 4, 384>}, {pipeline_mode = #tpu.pipeline_mode<synchronous>, transform_indices = @transform_1, window_bounds = array<i64: 9, 16, 4>}, {pipeline_mode = #tpu.pipeline_mode<synchronous>, transform_indices = @transform_2, window_bounds = array<i64: 16, 1>}, {transform_indices = @transform_3, window_bounds = array<i64: 1, 8, 288>}]} {
    %cst = arith.constant 0.000000e+00 : f32
    %0 = vector.broadcast %cst : f32 to vector<16x288xf32>
    %c0 = arith.constant 0 : index
    %c0_0 = arith.constant 0 : index
    %c0_1 = arith.constant 0 : index
    %1 = vector.load %arg1[%c0, %c0_0, %c0_1] : memref<1x4x384xf32, #tpu.memory_space<vmem>>, vector<1x4x288xf32>
    %2 = vector.shape_cast %1 : vector<1x4x288xf32> to vector<4x288xf32>
    %c0_2 = arith.constant 0 : index
    %c0_3 = arith.constant 0 : index
    %c0_4 = arith.constant 0 : index
    %3 = vector.load %arg2[%c0_2, %c0_3, %c0_4] : memref<9x16x4xf32, #tpu.memory_space<vmem>>, vector<1x16x4xf32>
    %4 = vector.shape_cast %3 : vector<1x16x4xf32> to vector<16x4xf32>
    %cst_5 = arith.constant dense<0.000000e+00> : vector<16x288xf32>
    %5 = tpu.matmul %4, %2, %cst_5 {dimension_numbers = #tpu.dot_dimension_numbers<[1], [0], [0], [1], [0, 0, 1, 1], [], []>} : vector<16x4xf32>, vector<4x288xf32>, vector<16x288xf32> -> vector<16x288xf32>
    %6 = arith.addf %0, %5 : vector<16x288xf32>
    %c0_6 = arith.constant 0 : index
    %c0_7 = arith.constant 0 : index
    %c1 = arith.constant 1 : index
    %7 = vector.load %arg1[%c0_6, %c0_7, %c1] : memref<1x4x384xf32, #tpu.memory_space<vmem>>, vector<1x4x288xf32>
    %8 = vector.shape_cast %7 : vector<1x4x288xf32> to vector<4x288xf32>
    %c1_8 = arith.constant 1 : index
    %c0_9 = arith.constant 0 : index
    %c0_10 = arith.constant 0 : index
    %9 = vector.load %arg2[%c1_8, %c0_9, %c0_10] : memref<9x16x4xf32, #tpu.memory_space<vmem>>, vector<1x16x4xf32>
    %10 = vector.shape_cast %9 : vector<1x16x4xf32> to vector<16x4xf32>
    %cst_11 = arith.constant dense<0.000000e+00> : vector<16x288xf32>
    %11 = tpu.matmul %10, %8, %cst_11 {dimension_numbers = #tpu.dot_dimension_numbers<[1], [0], [0], [1], [0, 0, 1, 1], [], []>} : vector<16x4xf32>, vector<4x288xf32>, vector<16x288xf32> -> vector<16x288xf32>
    %12 = arith.addf %6, %11 : vector<16x288xf32>
    %c0_12 = arith.constant 0 : index
    %c0_13 = arith.constant 0 : index
    %c2 = arith.constant 2 : index
    %13 = vector.load %arg1[%c0_12, %c0_13, %c2] : memref<1x4x384xf32, #tpu.memory_space<vmem>>, vector<1x4x288xf32>
    %14 = vector.shape_cast %13 : vector<1x4x288xf32> to vector<4x288xf32>
    %c2_14 = arith.constant 2 : index
    %c0_15 = arith.constant 0 : index
    %c0_16 = arith.constant 0 : index
    %15 = vector.load %arg2[%c2_14, %c0_15, %c0_16] : memref<9x16x4xf32, #tpu.memory_space<vmem>>, vector<1x16x4xf32>
    %16 = vector.shape_cast %15 : vector<1x16x4xf32> to vector<16x4xf32>
    %cst_17 = arith.constant dense<0.000000e+00> : vector<16x288xf32>
    %17 = tpu.matmul %16, %14, %cst_17 {dimension_numbers = #tpu.dot_dimension_numbers<[1], [0], [0], [1], [0, 0, 1, 1], [], []>} : vector<16x4xf32>, vector<4x288xf32>, vector<16x288xf32> -> vector<16x288xf32>
    %18 = arith.addf %12, %17 : vector<16x288xf32>
    %c0_18 = arith.constant 0 : index
    %c0_19 = arith.constant 0 : index
    %c18 = arith.constant 18 : index
    %19 = vector.load %arg1[%c0_18, %c0_19, %c18] : memref<1x4x384xf32, #tpu.memory_space<vmem>>, vector<1x4x288xf32>
    %20 = vector.shape_cast %19 : vector<1x4x288xf32> to vector<4x288xf32>
    %c3 = arith.constant 3 : index
    %c0_20 = arith.constant 0 : index
    %c0_21 = arith.constant 0 : index
    %21 = vector.load %arg2[%c3, %c0_20, %c0_21] : memref<9x16x4xf32, #tpu.memory_space<vmem>>, vector<1x16x4xf32>
    %22 = vector.shape_cast %21 : vector<1x16x4xf32> to vector<16x4xf32>
    %cst_22 = arith.constant dense<0.000000e+00> : vector<16x288xf32>
    %23 = tpu.matmul %22, %20, %cst_22 {dimension_numbers = #tpu.dot_dimension_numbers<[1], [0], [0], [1], [0, 0, 1, 1], [], []>} : vector<16x4xf32>, vector<4x288xf32>, vector<16x288xf32> -> vector<16x288xf32>
    %24 = arith.addf %18, %23 : vector<16x288xf32>
    %c0_23 = arith.constant 0 : index
    %c0_24 = arith.constant 0 : index
    %c19 = arith.constant 19 : index
    %25 = vector.load %arg1[%c0_23, %c0_24, %c19] : memref<1x4x384xf32, #tpu.memory_space<vmem>>, vector<1x4x288xf32>
    %26 = vector.shape_cast %25 : vector<1x4x288xf32> to vector<4x288xf32>
    %c4 = arith.constant 4 : index
    %c0_25 = arith.constant 0 : index
    %c0_26 = arith.constant 0 : index
    %27 = vector.load %arg2[%c4, %c0_25, %c0_26] : memref<9x16x4xf32, #tpu.memory_space<vmem>>, vector<1x16x4xf32>
    %28 = vector.shape_cast %27 : vector<1x16x4xf32> to vector<16x4xf32>
    %cst_27 = arith.constant dense<0.000000e+00> : vector<16x288xf32>
    %29 = tpu.matmul %28, %26, %cst_27 {dimension_numbers = #tpu.dot_dimension_numbers<[1], [0], [0], [1], [0, 0, 1, 1], [], []>} : vector<16x4xf32>, vector<4x288xf32>, vector<16x288xf32> -> vector<16x288xf32>
    %30 = arith.addf %24, %29 : vector<16x288xf32>
    %c0_28 = arith.constant 0 : index
    %c0_29 = arith.constant 0 : index
    %c20 = arith.constant 20 : index
    %31 = vector.load %arg1[%c0_28, %c0_29, %c20] : memref<1x4x384xf32, #tpu.memory_space<vmem>>, vector<1x4x288xf32>
    %32 = vector.shape_cast %31 : vector<1x4x288xf32> to vector<4x288xf32>
    %c5 = arith.constant 5 : index
    %c0_30 = arith.constant 0 : index
    %c0_31 = arith.constant 0 : index
    %33 = vector.load %arg2[%c5, %c0_30, %c0_31] : memref<9x16x4xf32, #tpu.memory_space<vmem>>, vector<1x16x4xf32>
    %34 = vector.shape_cast %33 : vector<1x16x4xf32> to vector<16x4xf32>
    %cst_32 = arith.constant dense<0.000000e+00> : vector<16x288xf32>
    %35 = tpu.matmul %34, %32, %cst_32 {dimension_numbers = #tpu.dot_dimension_numbers<[1], [0], [0], [1], [0, 0, 1, 1], [], []>} : vector<16x4xf32>, vector<4x288xf32>, vector<16x288xf32> -> vector<16x288xf32>
    %36 = arith.addf %30, %35 : vector<16x288xf32>
    %c0_33 = arith.constant 0 : index
    %c0_34 = arith.constant 0 : index
    %c36 = arith.constant 36 : index
    %37 = vector.load %arg1[%c0_33, %c0_34, %c36] : memref<1x4x384xf32, #tpu.memory_space<vmem>>, vector<1x4x288xf32>
    %38 = vector.shape_cast %37 : vector<1x4x288xf32> to vector<4x288xf32>
    %c6 = arith.constant 6 : index
    %c0_35 = arith.constant 0 : index
    %c0_36 = arith.constant 0 : index
    %39 = vector.load %arg2[%c6, %c0_35, %c0_36] : memref<9x16x4xf32, #tpu.memory_space<vmem>>, vector<1x16x4xf32>
    %40 = vector.shape_cast %39 : vector<1x16x4xf32> to vector<16x4xf32>
    %cst_37 = arith.constant dense<0.000000e+00> : vector<16x288xf32>
    %41 = tpu.matmul %40, %38, %cst_37 {dimension_numbers = #tpu.dot_dimension_numbers<[1], [0], [0], [1], [0, 0, 1, 1], [], []>} : vector<16x4xf32>, vector<4x288xf32>, vector<16x288xf32> -> vector<16x288xf32>
    %42 = arith.addf %36, %41 : vector<16x288xf32>
    %c0_38 = arith.constant 0 : index
    %c0_39 = arith.constant 0 : index
    %c37 = arith.constant 37 : index
    %43 = vector.load %arg1[%c0_38, %c0_39, %c37] : memref<1x4x384xf32, #tpu.memory_space<vmem>>, vector<1x4x288xf32>
    %44 = vector.shape_cast %43 : vector<1x4x288xf32> to vector<4x288xf32>
    %c7 = arith.constant 7 : index
    %c0_40 = arith.constant 0 : index
    %c0_41 = arith.constant 0 : index
    %45 = vector.load %arg2[%c7, %c0_40, %c0_41] : memref<9x16x4xf32, #tpu.memory_space<vmem>>, vector<1x16x4xf32>
    %46 = vector.shape_cast %45 : vector<1x16x4xf32> to vector<16x4xf32>
    %cst_42 = arith.constant dense<0.000000e+00> : vector<16x288xf32>
    %47 = tpu.matmul %46, %44, %cst_42 {dimension_numbers = #tpu.dot_dimension_numbers<[1], [0], [0], [1], [0, 0, 1, 1], [], []>} : vector<16x4xf32>, vector<4x288xf32>, vector<16x288xf32> -> vector<16x288xf32>
    %48 = arith.addf %42, %47 : vector<16x288xf32>
    %c0_43 = arith.constant 0 : index
    %c0_44 = arith.constant 0 : index
    %c38 = arith.constant 38 : index
    %49 = vector.load %arg1[%c0_43, %c0_44, %c38] : memref<1x4x384xf32, #tpu.memory_space<vmem>>, vector<1x4x288xf32>
    %50 = vector.shape_cast %49 : vector<1x4x288xf32> to vector<4x288xf32>
    %c8 = arith.constant 8 : index
    %c0_45 = arith.constant 0 : index
    %c0_46 = arith.constant 0 : index
    %51 = vector.load %arg2[%c8, %c0_45, %c0_46] : memref<9x16x4xf32, #tpu.memory_space<vmem>>, vector<1x16x4xf32>
    %52 = vector.shape_cast %51 : vector<1x16x4xf32> to vector<16x4xf32>
    %cst_47 = arith.constant dense<0.000000e+00> : vector<16x288xf32>
    %53 = tpu.matmul %52, %50, %cst_47 {dimension_numbers = #tpu.dot_dimension_numbers<[1], [0], [0], [1], [0, 0, 1, 1], [], []>} : vector<16x4xf32>, vector<4x288xf32>, vector<16x288xf32> -> vector<16x288xf32>
    %54 = arith.addf %48, %53 : vector<16x288xf32>
    %c0_48 = arith.constant 0 : index
    %c0_49 = arith.constant 0 : index
    %55 = vector.load %arg3[%c0_48, %c0_49] : memref<16x1xf32, #tpu.memory_space<vmem>>, vector<16x1xf32>
    %56 = vector.broadcast %55 : vector<16x1xf32> to vector<16x288xf32>
    %57 = arith.addf %54, %56 : vector<16x288xf32>
    %58 = vector.extract_strided_slice %57 {offsets = [0, 0], sizes = [8, 288], strides = [1, 1]} : vector<16x288xf32> to vector<8x288xf32>
    %59 = vector.extract_strided_slice %57 {offsets = [8, 0], sizes = [8, 288], strides = [1, 1]} : vector<16x288xf32> to vector<8x288xf32>
    %60 = arith.negf %59 : vector<8x288xf32>
    %61 = math.exp %60 : vector<8x288xf32>
    %cst_50 = arith.constant 1.000000e+00 : f32
    %62 = vector.broadcast %cst_50 : f32 to vector<8x288xf32>
    %63 = arith.addf %62, %61 : vector<8x288xf32>
    %64 = arith.divf %62, %63 : vector<8x288xf32>
    %65 = arith.mulf %58, %64 : vector<8x288xf32>
    %c0_51 = arith.constant 0 : index
    %c0_52 = arith.constant 0 : index
    %c0_53 = arith.constant 0 : index
    %66 = vector.load %arg4[%c0_51, %c0_52, %c0_53] : memref<1x8x288xf32, #tpu.memory_space<vmem>>, vector<1x8x288xf32>
    %67 = vector.shape_cast %66 : vector<1x8x288xf32> to vector<8x288xf32>
    %68 = vector.shape_cast %65 : vector<8x288xf32> to vector<1x8x288xf32>
    tpu.vector_store %arg4[%c0_51, %c0_52, %c0_53], %68 {strides = array<i32>} : memref<1x8x288xf32, #tpu.memory_space<vmem>>, vector<1x8x288xf32>,
    return
  }
  func.func @transform_0(%arg0: i32) -> (i32, i32, i32) {
    %c0_i32 = arith.constant 0 : i32
    %c0_i32_0 = arith.constant 0 : i32
    %c0_i32_1 = arith.constant 0 : i32
    return %arg0, %c0_i32, %c0_i32_0 : i32, i32, i32
  }
  func.func @transform_1(%arg0: i32) -> (i32, i32, i32) {
    %c0_i32 = arith.constant 0 : i32
    %c0_i32_0 = arith.constant 0 : i32
    %c0_i32_1 = arith.constant 0 : i32
    %c0_i32_2 = arith.constant 0 : i32
    return %c0_i32, %c0_i32_0, %c0_i32_1 : i32, i32, i32
  }
  func.func @transform_2(%arg0: i32) -> (i32, i32) {
    %c0_i32 = arith.constant 0 : i32
    %c0_i32_0 = arith.constant 0 : i32
    %c0_i32_1 = arith.constant 0 : i32
    return %c0_i32, %c0_i32_0 : i32, i32
  }
  func.func @transform_3(%arg0: i32) -> (i32, i32, i32) {
    %c0_i32 = arith.constant 0 : i32
    %c0_i32_0 = arith.constant 0 : i32
    %c0_i32_1 = arith.constant 0 : i32
    return %arg0, %c0_i32, %c0_i32_0 : i32, i32, i32
  }
}

</mosaic_0001>

<llo_original>
// kernel: gated_conv2d.1
$region0: #{gated_conv2d.1}
  #allocation0 [shape = 'u32[]', space=smem, size = 0x4, offset = 0x4, fixed_abs, tag = 'smem constant byte address 0x4 - core index']
  #allocation1 [shape = 'u32[144,128]{1,0:T(1,128)}', space=vmem, size = 0x12000, scoped, tag = 'internal scratch']
  %s0 = inlined_call_operand.vmem [shape: f32[2,4,384], index: 0, kind: input, shape index: {}]
  %s1 = inlined_call_operand.vmem [shape: f32[9,16,4], index: 1, kind: input, shape index: {}]
  %s2 = inlined_call_operand.vmem [shape: f32[16,1], index: 2, kind: input, shape index: {}]
  %s3 = inlined_call_operand.vmem [shape: f32[2,8,288], index: 3, kind: output, shape index: {}]
  %s4 = sld [smem:[#allocation0]]
  $region45: #{gated_conv2d.1} parent=0
    _
  %s6 = ssub.s32 1, %s4
  %s7 = scalar_select 0, %s6, %s4
  loop: start=0, step=1, limit=4
  $region2: #{gated_conv2d.1} parent=0 // loop_pre_header
    _
  $region3: #{gated_conv2d.1} parent=0 // loop_header
    %s9 = sphi 0, %s13
    %p10 = scmp.ge.s32.totalorder %s9, 4
    %s19 = sphi 0, %s21
    %s22 = sphi 0, %s19
    %s23 = sphi 0, %s22
    %s39 = sphi 0, %s23
    %s43 = sphi 0, %s43
    %s45 = sphi 0, %s43
    %s46 = sphi 0, %s45
    %s60 = sphi 0, %s46
    %s64 = sphi 0, %s64
    %s66 = sphi 0, %s64
    %s67 = sphi 0, %s66
    %s81 = sphi 0, %s67
    %s87 = sphi 0, %s89
    %s90 = sphi 0, %s87
    %s91 = sphi 0, %s90
    %s107 = sphi 0, %s91
  $region4: #{gated_conv2d.1} parent=0 // loop_header_branch
    %12 = sbr.rel (%p10) target = $region8
  $region5: #{gated_conv2d.1} parent=0 // loop_body
    %s14 = ssub.s32 %s9, 1
    %s15 = ssub.s32 %s9, 2
    %s16 = sadd.s32 %s9, 1
    %s17 = ssub.s32 %s9, %s16
    %p18 = scmp.eq.s32.totalorder %s17, 0
    %s20 = sadd.s32 %s19, 1
    %s21 = scalar_select %p18, %s19, %s20
    %p24 = pneg %p18
    %p25 = scmp.eq.s32.totalorder %s9, 1
    %p26 = por %p24, %p25
    %p27 = scmp.ne.s32.totalorder %s19, %s22
    %p28 = scmp.eq.s32.totalorder %s9, 0
    %p29 = por %p27, %p28
    %p30 = scmp.ne.s32.totalorder %s19, %s22
    %p31 = scmp.eq.s32.totalorder %s14, 1
    %p32 = por %p30, %p31
    %p33 = scmp.ne.s32.totalorder %s22, %s23
    %p34 = scmp.eq.s32.totalorder %s14, 0
    %p35 = por %p33, %p34
    %p36 = scmp.ne.s32.totalorder %s22, %s23
    %p37 = scmp.eq.s32.totalorder %s15, 1
    %p38 = por %p36, %p37
    %p40 = scmp.ne.s32.totalorder %s23, %s39
    %p41 = scmp.eq.s32.totalorder %s15, 0
    %p42 = por %p40, %p41
    %s44 = sadd.s32 %s43, 1
    %p47 = scmp.eq.s32.totalorder %s9, 1
    %p48 = scmp.ne.s32.totalorder %s43, %s45
    %p49 = scmp.eq.s32.totalorder %s9, 0
    %p50 = por %p48, %p49
    %p51 = scmp.ne.s32.totalorder %s43, %s45
    %p52 = scmp.eq.s32.totalorder %s14, 1
    %p53 = por %p51, %p52
    %p54 = scmp.ne.s32.totalorder %s45, %s46
    %p55 = scmp.eq.s32.totalorder %s14, 0
    %p56 = por %p54, %p55
    %p57 = scmp.ne.s32.totalorder %s45, %s46
    %p58 = scmp.eq.s32.totalorder %s15, 1
    %p59 = por %p57, %p58
    %p61 = scmp.ne.s32.totalorder %s46, %s60
    %p62 = scmp.eq.s32.totalorder %s15, 0
    %p63 = por %p61, %p62
    %s65 = sadd.s32 %s64, 1
    %p68 = scmp.eq.s32.totalorder %s9, 1
    %p69 = scmp.ne.s32.totalorder %s64, %s66
    %p70 = scmp.eq.s32.totalorder %s9, 0
    %p71 = por %p69, %p70
    %p72 = scmp.ne.s32.totalorder %s64, %s66
    %p73 = scmp.eq.s32.totalorder %s14, 1
    %p74 = por %p72, %p73
    %p75 = scmp.ne.s32.totalorder %s66, %s67
    %p76 = scmp.eq.s32.totalorder %s14, 0
    %p77 = por %p75, %p76
    %p78 = scmp.ne.s32.totalorder %s66, %s67
    %p79 = scmp.eq.s32.totalorder %s15, 1
    %p80 = por %p78, %p79
    %p82 = scmp.ne.s32.totalorder %s67, %s81
    %p83 = scmp.eq.s32.totalorder %s15, 0
    %p84 = por %p82, %p83
    %s85 = ssub.s32 %s9, %s16
    %p86 = scmp.eq.s32.totalorder %s85, 0
    %s88 = sadd.s32 %s87, 1
    %s89 = scalar_select %p86, %s87, %s88
    %p92 = pneg %p86
    %p93 = scmp.eq.s32.totalorder %s9, 1
    %p94 = por %p92, %p93
    %p95 = scmp.ne.s32.totalorder %s87, %s90
    %p96 = scmp.eq.s32.totalorder %s9, 0
    %p97 = por %p95, %p96
    %p98 = scmp.ne.s32.totalorder %s87, %s90
    %p99 = scmp.eq.s32.totalorder %s14, 1
    %p100 = por %p98, %p99
    %p101 = scmp.ne.s32.totalorder %s90, %s91
    %p102 = scmp.eq.s32.totalorder %s14, 0
    %p103 = por %p101, %p102
    %p104 = scmp.ne.s32.totalorder %s90, %s91
    %p105 = scmp.eq.s32.totalorder %s15, 1
    %p106 = por %p104, %p105
    %p108 = scmp.ne.s32.totalorder %s91, %s107
    %p109 = scmp.eq.s32.totalorder %s15, 0
    %p110 = por %p108, %p109
    %p111 = scmp.le.s32.totalorder 1, %s9
    %p112 = scmp.lt.s32.totalorder %s9, 3
    %p113 = pnand %p111, %p112
    %p114 = pneg %p113
    // Predicated region
    $region9: #{gated_conv2d.1} parent=5 // pred_check
      _
    $region10: #{gated_conv2d.1} parent=5 // pred_check_branch
      %116 = sbr.rel (%p113) target = $region12
    $region11: #{gated_conv2d.1} parent=5 // pred_region
      %s117 = ssub.s32 %s9, 1
      // Predicated region
      $region13: #{gated_conv2d.1} parent=11 // pred_check
        %p118 = pneg %p56
      $region14: #{gated_conv2d.1} parent=11 // pred_check_branch
        %120 = sbr.rel (%p118) target = $region16
      $region15: #{gated_conv2d.1} parent=11 // pred_region
        _
      $region16: #{gated_conv2d.1} parent=11 // pred_fallthru
        _
      // Predicated region
      $region17: #{gated_conv2d.1} parent=11 // pred_check
        %p121 = pneg %p77
      $region18: #{gated_conv2d.1} parent=11 // pred_check_branch
        %123 = sbr.rel (%p121) target = $region20
      $region19: #{gated_conv2d.1} parent=11 // pred_region
        _
      $region20: #{gated_conv2d.1} parent=11 // pred_fallthru
        _
    $region12: #{gated_conv2d.1} parent=5 // pred_fallthru
      _
    %p124 = scmp.lt.s32.totalorder %s9, 2
    // Predicated region
    $region21: #{gated_conv2d.1} parent=5 // pred_check
      %p125 = pneg %p124
    $region22: #{gated_conv2d.1} parent=5 // pred_check_branch
      %127 = sbr.rel (%p125) target = $region24
    $region23: #{gated_conv2d.1} parent=5 // pred_region
      // Predicated region
      $region25: #{gated_conv2d.1} parent=23 // pred_check
        %p128 = pneg %p29
      $region26: #{gated_conv2d.1} parent=23 // pred_check_branch
        %130 = sbr.rel (%p128) target = $region28
      $region27: #{gated_conv2d.1} parent=23 // pred_region
        %p131 = scmp.lt.s32.totalorder %s9, 1
        %s132 = scalar_select %p131, %s9, 1
        %s133 = smul.addr %s132, 3
        %s134 = smul.addr %s133, 4
        %s135 = scalar_lea.vmem %s0, %s134
      $region28: #{gated_conv2d.1} parent=23 // pred_fallthru
        _
    $region24: #{gated_conv2d.1} parent=5 // pred_fallthru
      _
    %p136 = scmp.le.s32.totalorder 1, %s9
    %p137 = scmp.lt.s32.totalorder %s9, 3
    %p138 = pnand %p136, %p137
    %p139 = pneg %p138
    // Predicated region
    $region29: #{gated_conv2d.1} parent=5 // pred_check
      _
    $region30: #{gated_conv2d.1} parent=5 // pred_check_branch
      %141 = sbr.rel (%p138) target = $region32
    $region31: #{gated_conv2d.1} parent=5 // pred_region
      %s142 = ssub.s32 %s9, 1
      %p143 = scmp.lt.s32.totalorder %s14, 1
      %s144 = scalar_select %p143, %s14, 1
      %s145 = smul.addr %s144, 3
      %s146 = smul.addr %s145, 4
      %s147 = scalar_lea.vmem %s0, %s146
      %p148 = pneg %p35
      %p149 = pneg %p32
      %p150 = pneg %p56
      %p151 = pneg %p53
      %p152 = pneg %p77
      %p153 = pneg %p74
      %p154 = pneg %p103
      %p155 = pneg %p100
      %p156 = scmp.lt.s32.totalorder %s14, 1
      %s157 = scalar_select %p156, %s14, 1
      %s158 = smul.addr %s157, 3
      %s159 = smul.addr %s158, 8
      %s160 = scalar_lea.vmem %s3, %s159
      %p161 = scmp.lt.s32.totalorder %s14, 1
      %s162 = scalar_select %p161, %s14, 1
      %s163 = smul.addr %s162, 3
      %s164 = smul.addr %s163, 4
      %s165 = scalar_lea.vmem %s0, %s164
      %p166 = scmp.lt.s32.totalorder %s14, 1
      %s167 = scalar_select %p166, %s14, 1
      %s168 = smul.addr %s167, 3
      %s169 = smul.addr %s168, 8
      %s170 = scalar_lea.vmem %s3, %s169
      %v171 = vld [vmem:[%s165] sm:$0xff]
      %v172 = vld [vmem:[%s165 + $0x8] sm:$0xf]
      %v173 = vld [vmem:[%s1] sm:$0xff]
      %v174 = vld [vmem:[%s1 + $0x8] sm:$0xff]
      %s175 = scalar_lea.vmem %s1, 16
      %v176 = vld [vmem:[%s175] sm:$0xff]
      %v177 = vld [vmem:[%s175 + $0x8] sm:$0xff]
      %v180 = vcombine.high %v171, %v171
      %181 = vrot.lane.b32.xlu0 %v171, 127
      %v182 = vpop.permute.xlu0 %181
      %183 = vrot.lane.b32.xlu0 %v180, 127
      %v184 = vpop.permute.xlu0 %183
      %185 = vrot.lane.b32.xlu0 %v172, 127
      %v186 = vpop.permute.xlu0 %185
      %vm187 = vcmask 1039360
      %v188 = vsel %vm187, %v182, %v184
      %v189 = vsel %vm187, %v184, %v186
      %vm190 = vcmask 31744
      %v192 = vsel %vm190, %v176, 0
      %v195 = vsel %vm190, %v177, 0
      %vm197 = vcmask 1043456
      %v198 = vsel %vm197, %v188, 0
      %v200 = vsel %vm197, %v189, 0
      %v202 = vsel %vm197, %v186, 0
      %204 = vmatprep.subr.mxu0 0.0
      %205 = vmatpush1.msra.mxu0 0.0
      %206 = vmatprep.subr.mxu0 0.0
      %207 = vmatpush1.msra.mxu0 0.0
      %208 = vmatprep.subr.mxu0 0.0
      %209 = vmatpush1.msra.mxu0 0.0
      %210 = vmatprep.subr.mxu0 0.0
      %211 = vmatpush1.msra.mxu0 0.0
      %212 = vmatprep.subr.mxu0 0.0
      %213 = vmatpush1.msra.mxu0 0.0
      %214 = vmatprep.subr.mxu0 0.0
      %215 = vmatpush1.msra.mxu0 0.0
      %216 = vmatprep.subr.mxu0 0.0
      %217 = vmatpush1.msra.mxu0 0.0
      %218 = vmatprep.subr.mxu0 0.0
      %219 = vmatpush1.msra.mxu0 0.0
      %220 = vmatprep.subr.mxu0 0.0
      %221 = vmatpush1.msra.mxu0 0.0
      %222 = vmatprep.subr.mxu0 0.0
      %223 = vmatpush1.msra.mxu0 0.0
      %224 = vmatprep.subr.mxu0 0.0
      %225 = vmatpush1.msra.mxu0 0.0
      %226 = vmatprep.subr.mxu0 0.0
      %227 = vmatpush1.msra.mxu0 0.0
      %228 = vmatprep.subr.mxu0 0.0
      %229 = vmatpush1.msra.mxu0 0.0
      %230 = vmatprep.subr.mxu0 0.0
      %231 = vmatpush1.msra.mxu0 0.0
      %232 = vmatprep.subr.mxu0 0.0
      %233 = vmatpush1.msra.mxu0 0.0
      %234 = vmatprep.subr.mxu0 %v200
      %235 = vmatpush1.msra.mxu0 %v198
      %236 = vmatprep.subr.mxu0 0.0
      %237 = vmatpush2.msra.mxu0 0.0
      %238 = vmatprep.subr.mxu0 0.0
      %239 = vmatpush2.msra.mxu0 0.0
      %240 = vmatprep.subr.mxu0 0.0
      %241 = vmatpush2.msra.mxu0 0.0
      %242 = vmatprep.subr.mxu0 0.0
      %243 = vmatpush2.msra.mxu0 0.0
      %244 = vmatprep.subr.mxu0 0.0
      %245 = vmatpush2.msra.mxu0 0.0
      %246 = vmatprep.subr.mxu0 0.0
      %247 = vmatpush2.msra.mxu0 0.0
      %248 = vmatprep.subr.mxu0 0.0
      %249 = vmatpush2.msra.mxu0 0.0
      %250 = vmatprep.subr.mxu0 0.0
      %251 = vmatpush2.msra.mxu0 0.0
      %252 = vmatprep.subr.mxu0 0.0
      %253 = vmatpush2.msra.mxu0 0.0
      %254 = vmatprep.subr.mxu0 0.0
      %255 = vmatpush2.msra.mxu0 0.0
      %256 = vmatprep.subr.mxu0 0.0
      %257 = vmatpush2.msra.mxu0 0.0
      %258 = vmatprep.subr.mxu0 0.0
      %259 = vmatpush2.msra.mxu0 0.0
      %260 = vmatprep.subr.mxu0 0.0
      %261 = vmatpush2.msra.mxu0 0.0
      %262 = vmatprep.subr.mxu0 0.0
      %263 = vmatpush2.msra.mxu0 0.0
      %264 = vmatprep.subr.mxu0 0.0
      %265 = vmatpush2.msra.mxu0 0.0
      %266 = vmatprep.subr.mxu0 0.0
      %267 = vmatpush2.msra.mxu0 0.0
      %268 = vmatprep.mubr.f32.mxu0 0.0
      %269 = vmatmul.mubr.f32.gmra.mxu0 %v192
      %v270 = vpop.f32.mrf.mxu0
      %v271 = vadd.f32 0.0, %v270
      %v272 = vpop.f32.mrf.mxu0
      %v273 = vadd.f32 0.0, %v272
      %274 = vmatprep.mubr.f32.mxu0 0.0
      %275 = vmatmul.mubr.f32.gmra.mxu0 %v195
      %v276 = vpop.f32.mrf.mxu0
      %v277 = vadd.f32 0.0, %v276
      %v278 = vpop.f32.mrf.mxu0
      %v279 = vadd.f32 0.0, %v278
      %280 = vdwg.mxu0
      %281 = vmatprep.subr.mxu0 0.0
      %282 = vmatpush1.msra.mxu0 0.0
      %283 = vmatprep.subr.mxu0 0.0
      %284 = vmatpush1.msra.mxu0 0.0
      %285 = vmatprep.subr.mxu0 0.0
      %286 = vmatpush1.msra.mxu0 0.0
      %287 = vmatprep.subr.mxu0 0.0
      %288 = vmatpush1.msra.mxu0 0.0
      %289 = vmatprep.subr.mxu0 0.0
      %290 = vmatpush1.msra.mxu0 0.0
      %291 = vmatprep.subr.mxu0 0.0
      %292 = vmatpush1.msra.mxu0 0.0
      %293 = vmatprep.subr.mxu0 0.0
      %294 = vmatpush1.msra.mxu0 0.0
      %295 = vmatprep.subr.mxu0 0.0
      %296 = vmatpush1.msra.mxu0 0.0
      %297 = vmatprep.subr.mxu0 0.0
      %298 = vmatpush1.msra.mxu0 0.0
      %299 = vmatprep.subr.mxu0 0.0
      %300 = vmatpush1.msra.mxu0 0.0
      %301 = vmatprep.subr.mxu0 0.0
      %302 = vmatpush1.msra.mxu0 0.0
      %303 = vmatprep.subr.mxu0 0.0
      %304 = vmatpush1.msra.mxu0 0.0
      %305 = vmatprep.subr.mxu0 0.0
      %306 = vmatpush1.msra.mxu0 0.0
      %307 = vmatprep.subr.mxu0 0.0
      %308 = vmatpush1.msra.mxu0 0.0
      %309 = vmatprep.subr.mxu0 0.0
      %310 = vmatpush1.msra.mxu0 0.0
      %311 = vmatprep.subr.mxu0 0.0
      %312 = vmatpush1.msra.mxu0 %v202
      %313 = vmatprep.subr.mxu0 0.0
      %314 = vmatpush2.msra.mxu0 0.0
      %315 = vmatprep.subr.mxu0 0.0
      %316 = vmatpush2.msra.mxu0 0.0
      %317 = vmatprep.subr.mxu0 0.0
      %318 = vmatpush2.msra.mxu0 0.0
      %319 = vmatprep.subr.mxu0 0.0
      %320 = vmatpush2.msra.mxu0 0.0
      %321 = vmatprep.subr.mxu0 0.0
      %322 = vmatpush2.msra.mxu0 0.0
      %323 = vmatprep.subr.mxu0 0.0
      %324 = vmatpush2.msra.mxu0 0.0
      %325 = vmatprep.subr.mxu0 0.0
      %326 = vmatpush2.msra.mxu0 0.0
      %327 = vmatprep.subr.mxu0 0.0
      %328 = vmatpush2.msra.mxu0 0.0
      %329 = vmatprep.subr.mxu0 0.0
      %330 = vmatpush2.msra.mxu0 0.0
      %331 = vmatprep.subr.mxu0 0.0
      %332 = vmatpush2.msra.mxu0 0.0
      %333 = vmatprep.subr.mxu0 0.0
      %334 = vmatpush2.msra.mxu0 0.0
      %335 = vmatprep.subr.mxu0 0.0
      %336 = vmatpush2.msra.mxu0 0.0
      %337 = vmatprep.subr.mxu0 0.0
      %338 = vmatpush2.msra.mxu0 0.0
      %339 = vmatprep.subr.mxu0 0.0
      %340 = vmatpush2.msra.mxu0 0.0
      %341 = vmatprep.subr.mxu0 0.0
      %342 = vmatpush2.msra.mxu0 0.0
      %343 = vmatprep.subr.mxu0 0.0
      %344 = vmatpush2.msra.mxu0 0.0
      %345 = vmatprep.mubr.f32.mxu0 0.0
      %346 = vmatmul.mubr.f32.gmra.mxu0 %v192
      %v347 = vpop.f32.mrf.mxu0
      %v348 = vadd.f32 0.0, %v347
      %v349 = vpop.f32.mrf.mxu0
      %350 = vmatprep.mubr.f32.mxu0 0.0
      %351 = vmatmul.mubr.f32.gmra.mxu0 %v195
      %v352 = vpop.f32.mrf.mxu0
      %v353 = vadd.f32 0.0, %v352
      %v354 = vpop.f32.mrf.mxu0
      %355 = vdwg.mxu0
      %v357 = vsel %vm190, %v173, 0
      %v360 = vsel %vm190, %v174, 0
      %v362 = vsel %vm197, %v171, 0
      %v364 = vsel %vm197, %v180, 0
      %v366 = vsel %vm197, %v172, 0
      %368 = vmatprep.subr.mxu0 0.0
      %369 = vmatpush1.msra.mxu0 0.0
      %370 = vmatprep.subr.mxu0 0.0
      %371 = vmatpush1.msra.mxu0 0.0
      %372 = vmatprep.subr.mxu0 0.0
      %373 = vmatpush1.msra.mxu0 0.0
      %374 = vmatprep.subr.mxu0 0.0
      %375 = vmatpush1.msra.mxu0 0.0
      %376 = vmatprep.subr.mxu0 0.0
      %377 = vmatpush1.msra.mxu0 0.0
      %378 = vmatprep.subr.mxu0 0.0
      %379 = vmatpush1.msra.mxu0 0.0
      %380 = vmatprep.subr.mxu0 0.0
      %381 = vmatpush1.msra.mxu0 0.0
      %382 = vmatprep.subr.mxu0 0.0
      %383 = vmatpush1.msra.mxu0 0.0
      %384 = vmatprep.subr.mxu0 0.0
      %385 = vmatpush1.msra.mxu0 0.0
      %386 = vmatprep.subr.mxu0 0.0
      %387 = vmatpush1.msra.mxu0 0.0
      %388 = vmatprep.subr.mxu0 0.0
      %389 = vmatpush1.msra.mxu0 0.0
      %390 = vmatprep.subr.mxu0 0.0
      %391 = vmatpush1.msra.mxu0 0.0
      %392 = vmatprep.subr.mxu0 0.0
      %393 = vmatpush1.msra.mxu0 0.0
      %394 = vmatprep.subr.mxu0 0.0
      %395 = vmatpush1.msra.mxu0 0.0
      %396 = vmatprep.subr.mxu0 0.0
      %397 = vmatpush1.msra.mxu0 0.0
      %398 = vmatprep.subr.mxu0 %v364
      %399 = vmatpush1.msra.mxu0 %v362
      %400 = vmatprep.subr.mxu0 0.0
      %401 = vmatpush2.msra.mxu0 0.0
      %402 = vmatprep.subr.mxu0 0.0
      %403 = vmatpush2.msra.mxu0 0.0
      %404 = vmatprep.subr.mxu0 0.0
      %405 = vmatpush2.msra.mxu0 0.0
      %406 = vmatprep.subr.mxu0 0.0
      %407 = vmatpush2.msra.mxu0 0.0
      %408 = vmatprep.subr.mxu0 0.0
      %409 = vmatpush2.msra.mxu0 0.0
      %410 = vmatprep.subr.mxu0 0.0
      %411 = vmatpush2.msra.mxu0 0.0
      %412 = vmatprep.subr.mxu0 0.0
      %413 = vmatpush2.msra.mxu0 0.0
      %414 = vmatprep.subr.mxu0 0.0
      %415 = vmatpush2.msra.mxu0 0.0
      %416 = vmatprep.subr.mxu0 0.0
      %417 = vmatpush2.msra.mxu0 0.0
      %418 = vmatprep.subr.mxu0 0.0
      %419 = vmatpush2.msra.mxu0 0.0
      %420 = vmatprep.subr.mxu0 0.0
      %421 = vmatpush2.msra.mxu0 0.0
      %422 = vmatprep.subr.mxu0 0.0
      %423 = vmatpush2.msra.mxu0 0.0
      %424 = vmatprep.subr.mxu0 0.0
      %425 = vmatpush2.msra.mxu0 0.0
      %426 = vmatprep.subr.mxu0 0.0
      %427 = vmatpush2.msra.mxu0 0.0
      %428 = vmatprep.subr.mxu0 0.0
      %429 = vmatpush2.msra.mxu0 0.0
      %430 = vmatprep.subr.mxu0 0.0
      %431 = vmatpush2.msra.mxu0 0.0
      %432 = vmatprep.mubr.f32.mxu0 0.0
      %433 = vmatmul.mubr.f32.gmra.mxu0 %v357
      %v434 = vpop.f32.mrf.mxu0
      %v435 = vadd.f32 %v271, %v434
      %v436 = vpop.f32.mrf.mxu0
      %v437 = vadd.f32 %v273, %v436
      %438 = vmatprep.mubr.f32.mxu0 0.0
      %439 = vmatmul.mubr.f32.gmra.mxu0 %v360
      %v440 = vpop.f32.mrf.mxu0
      %v441 = vadd.f32 %v277, %v440
      %v442 = vpop.f32.mrf.mxu0
      %v443 = vadd.f32 %v279, %v442
      %444 = vdwg.mxu0
      %445 = vmatprep.subr.mxu0 0.0
      %446 = vmatpush1.msra.mxu0 0.0
      %447 = vmatprep.subr.mxu0 0.0
      %448 = vmatpush1.msra.mxu0 0.0
      %449 = vmatprep.subr.mxu0 0.0
      %450 = vmatpush1.msra.mxu0 0.0
      %451 = vmatprep.subr.mxu0 0.0
      %452 = vmatpush1.msra.mxu0 0.0
      %453 = vmatprep.subr.mxu0 0.0
      %454 = vmatpush1.msra.mxu0 0.0
      %455 = vmatprep.subr.mxu0 0.0
      %456 = vmatpush1.msra.mxu0 0.0
      %457 = vmatprep.subr.mxu0 0.0
      %458 = vmatpush1.msra.mxu0 0.0
      %459 = vmatprep.subr.mxu0 0.0
      %460 = vmatpush1.msra.mxu0 0.0
      %461 = vmatprep.subr.mxu0 0.0
      %462 = vmatpush1.msra.mxu0 0.0
      %463 = vmatprep.subr.mxu0 0.0
      %464 = vmatpush1.msra.mxu0 0.0
      %465 = vmatprep.subr.mxu0 0.0
      %466 = vmatpush1.msra.mxu0 0.0
      %467 = vmatprep.subr.mxu0 0.0
      %468 = vmatpush1.msra.mxu0 0.0
      %469 = vmatprep.subr.mxu0 0.0
      %470 = vmatpush1.msra.mxu0 0.0
      %471 = vmatprep.subr.mxu0 0.0
      %472 = vmatpush1.msra.mxu0 0.0
      %473 = vmatprep.subr.mxu0 0.0
      %474 = vmatpush1.msra.mxu0 0.0
      %475 = vmatprep.subr.mxu0 0.0
      %476 = vmatpush1.msra.mxu0 %v366
      %477 = vmatprep.subr.mxu0 0.0
      %478 = vmatpush2.msra.mxu0 0.0
      %479 = vmatprep.subr.mxu0 0.0
      %480 = vmatpush2.msra.mxu0 0.0
      %481 = vmatprep.subr.mxu0 0.0
      %482 = vmatpush2.msra.mxu0 0.0
      %483 = vmatprep.subr.mxu0 0.0
      %484 = vmatpush2.msra.mxu0 0.0
      %485 = vmatprep.subr.mxu0 0.0
      %486 = vmatpush2.msra.mxu0 0.0
      %487 = vmatprep.subr.mxu0 0.0
      %488 = vmatpush2.msra.mxu0 0.0
      %489 = vmatprep.subr.mxu0 0.0
      %490 = vmatpush2.msra.mxu0 0.0
      %491 = vmatprep.subr.mxu0 0.0
      %492 = vmatpush2.msra.mxu0 0.0
      %493 = vmatprep.subr.mxu0 0.0
      %494 = vmatpush2.msra.mxu0 0.0
      %495 = vmatprep.subr.mxu0 0.0
      %496 = vmatpush2.msra.mxu0 0.0
      %497 = vmatprep.subr.mxu0 0.0
      %498 = vmatpush2.msra.mxu0 0.0
      %499 = vmatprep.subr.mxu0 0.0
      %500 = vmatpush2.msra.mxu0 0.0
      %501 = vmatprep.subr.mxu0 0.0
      %502 = vmatpush2.msra.mxu0 0.0
      %503 = vmatprep.subr.mxu0 0.0
      %504 = vmatpush2.msra.mxu0 0.0
      %505 = vmatprep.subr.mxu0 0.0
      %506 = vmatpush2.msra.mxu0 0.0
      %507 = vmatprep.subr.mxu0 0.0
      %508 = vmatpush2.msra.mxu0 0.0
      %509 = vmatprep.mubr.f32.mxu0 0.0
      %510 = vmatmul.mubr.f32.gmra.mxu0 %v357
      %v511 = vpop.f32.mrf.mxu0
      %v512 = vadd.f32 %v348, %v511
      %v513 = vpop.f32.mrf.mxu0
      %514 = vmatprep.mubr.f32.mxu0 0.0
      %515 = vmatmul.mubr.f32.gmra.mxu0 %v360
      %v516 = vpop.f32.mrf.mxu0
      %v517 = vadd.f32 %v353, %v516
      %v518 = vpop.f32.mrf.mxu0
      %519 = vdwg.mxu0
      %v520 = vld [vmem:[%s165] sm:$0xff]
      %v521 = vld [vmem:[%s165 + $0x8] sm:$0xf]
      %s522 = scalar_lea.vmem %s1, 32
      %v523 = vld [vmem:[%s522] sm:$0xff]
      %v524 = vld [vmem:[%s522 + $0x8] sm:$0xff]
      %v527 = vcombine.high %v520, %v520
      %528 = vrot.lane.b32.xlu0 %v520, 126
      %v529 = vpop.permute.xlu0 %528
      %530 = vrot.lane.b32.xlu0 %v527, 126
      %v531 = vpop.permute.xlu0 %530
      %532 = vrot.lane.b32.xlu0 %v521, 126
      %v533 = vpop.permute.xlu0 %532
      %vm534 = vcmask 1031168
      %v535 = vsel %vm534, %v529, %v531
      %v536 = vsel %vm534, %v531, %v533
      %v538 = vsel %vm190, %v523, 0
      %v541 = vsel %vm190, %v524, 0
      %v543 = vsel %vm197, %v535, 0
      %v545 = vsel %vm197, %v536, 0
      %v547 = vsel %vm197, %v533, 0
      %549 = vmatprep.subr.mxu0 0.0
      %550 = vmatpush1.msra.mxu0 0.0
      %551 = vmatprep.subr.mxu0 0.0
      %552 = vmatpush1.msra.mxu0 0.0
      %553 = vmatprep.subr.mxu0 0.0
      %554 = vmatpush1.msra.mxu0 0.0
      %555 = vmatprep.subr.mxu0 0.0
      %556 = vmatpush1.msra.mxu0 0.0
      %557 = vmatprep.subr.mxu0 0.0
      %558 = vmatpush1.msra.mxu0 0.0
      %559 = vmatprep.subr.mxu0 0.0
      %560 = vmatpush1.msra.mxu0 0.0
      %561 = vmatprep.subr.mxu0 0.0
      %562 = vmatpush1.msra.mxu0 0.0
      %563 = vmatprep.subr.mxu0 0.0
      %564 = vmatpush1.msra.mxu0 0.0
      %565 = vmatprep.subr.mxu0 0.0
      %566 = vmatpush1.msra.mxu0 0.0
      %567 = vmatprep.subr.mxu0 0.0
      %568 = vmatpush1.msra.mxu0 0.0
      %569 = vmatprep.subr.mxu0 0.0
      %570 = vmatpush1.msra.mxu0 0.0
      %571 = vmatprep.subr.mxu0 0.0
      %572 = vmatpush1.msra.mxu0 0.0
      %573 = vmatprep.subr.mxu0 0.0
      %574 = vmatpush1.msra.mxu0 0.0
      %575 = vmatprep.subr.mxu0 0.0
      %576 = vmatpush1.msra.mxu0 0.0
      %577 = vmatprep.subr.mxu0 0.0
      %578 = vmatpush1.msra.mxu0 0.0
      %579 = vmatprep.subr.mxu0 %v545
      %580 = vmatpush1.msra.mxu0 %v543
      %581 = vmatprep.subr.mxu0 0.0
      %582 = vmatpush2.msra.mxu0 0.0
      %583 = vmatprep.subr.mxu0 0.0
      %584 = vmatpush2.msra.mxu0 0.0
      %585 = vmatprep.subr.mxu0 0.0
      %586 = vmatpush2.msra.mxu0 0.0
      %587 = vmatprep.subr.mxu0 0.0
      %588 = vmatpush2.msra.mxu0 0.0
      %589 = vmatprep.subr.mxu0 0.0
      %590 = vmatpush2.msra.mxu0 0.0
      %591 = vmatprep.subr.mxu0 0.0
      %592 = vmatpush2.msra.mxu0 0.0
      %593 = vmatprep.subr.mxu0 0.0
      %594 = vmatpush2.msra.mxu0 0.0
      %595 = vmatprep.subr.mxu0 0.0
      %596 = vmatpush2.msra.mxu0 0.0
      %597 = vmatprep.subr.mxu0 0.0
      %598 = vmatpush2.msra.mxu0 0.0
      %599 = vmatprep.subr.mxu0 0.0
      %600 = vmatpush2.msra.mxu0 0.0
      %601 = vmatprep.subr.mxu0 0.0
      %602 = vmatpush2.msra.mxu0 0.0
      %603 = vmatprep.subr.mxu0 0.0
      %604 = vmatpush2.msra.mxu0 0.0
      %605 = vmatprep.subr.mxu0 0.0
      %606 = vmatpush2.msra.mxu0 0.0
      %607 = vmatprep.subr.mxu0 0.0
      %608 = vmatpush2.msra.mxu0 0.0
      %609 = vmatprep.subr.mxu0 0.0
      %610 = vmatpush2.msra.mxu0 0.0
      %611 = vmatprep.subr.mxu0 0.0
      %612 = vmatpush2.msra.mxu0 0.0
      %613 = vmatprep.mubr.f32.mxu0 0.0
      %614 = vmatmul.mubr.f32.gmra.mxu0 %v538
      %v615 = vpop.f32.mrf.mxu0
      %v616 = vadd.f32 0.0, %v615
      %v617 = vpop.f32.mrf.mxu0
      %v618 = vadd.f32 0.0, %v617
      %619 = vmatprep.mubr.f32.mxu0 0.0
      %620 = vmatmul.mubr.f32.gmra.mxu0 %v541
      %v621 = vpop.f32.mrf.mxu0
      %v622 = vadd.f32 0.0, %v621
      %v623 = vpop.f32.mrf.mxu0
      %v624 = vadd.f32 0.0, %v623
      %625 = vdwg.mxu0
      %626 = vmatprep.subr.mxu0 0.0
      %627 = vmatpush1.msra.mxu0 0.0
      %628 = vmatprep.subr.mxu0 0.0
      %629 = vmatpush1.msra.mxu0 0.0
      %630 = vmatprep.subr.mxu0 0.0
      %631 = vmatpush1.msra.mxu0 0.0
      %632 = vmatprep.subr.mxu0 0.0
      %633 = vmatpush1.msra.mxu0 0.0
      %634 = vmatprep.subr.mxu0 0.0
      %635 = vmatpush1.msra.mxu0 0.0
      %636 = vmatprep.subr.mxu0 0.0
      %637 = vmatpush1.msra.mxu0 0.0
      %638 = vmatprep.subr.mxu0 0.0
      %639 = vmatpush1.msra.mxu0 0.0
      %640 = vmatprep.subr.mxu0 0.0
      %641 = vmatpush1.msra.mxu0 0.0
      %642 = vmatprep.subr.mxu0 0.0
      %643 = vmatpush1.msra.mxu0 0.0
      %644 = vmatprep.subr.mxu0 0.0
      %645 = vmatpush1.msra.mxu0 0.0
      %646 = vmatprep.subr.mxu0 0.0
      %647 = vmatpush1.msra.mxu0 0.0
      %648 = vmatprep.subr.mxu0 0.0
      %649 = vmatpush1.msra.mxu0 0.0
      %650 = vmatprep.subr.mxu0 0.0
      %651 = vmatpush1.msra.mxu0 0.0
      %652 = vmatprep.subr.mxu0 0.0
      %653 = vmatpush1.msra.mxu0 0.0
      %654 = vmatprep.subr.mxu0 0.0
      %655 = vmatpush1.msra.mxu0 0.0
      %656 = vmatprep.subr.mxu0 0.0
      %657 = vmatpush1.msra.mxu0 %v547
      %658 = vmatprep.subr.mxu0 0.0
      %659 = vmatpush2.msra.mxu0 0.0
      %660 = vmatprep.subr.mxu0 0.0
      %661 = vmatpush2.msra.mxu0 0.0
      %662 = vmatprep.subr.mxu0 0.0
      %663 = vmatpush2.msra.mxu0 0.0
      %664 = vmatprep.subr.mxu0 0.0
      %665 = vmatpush2.msra.mxu0 0.0
      %666 = vmatprep.subr.mxu0 0.0
      %667 = vmatpush2.msra.mxu0 0.0
      %668 = vmatprep.subr.mxu0 0.0
      %669 = vmatpush2.msra.mxu0 0.0
      %670 = vmatprep.subr.mxu0 0.0
      %671 = vmatpush2.msra.mxu0 0.0
      %672 = vmatprep.subr.mxu0 0.0
      %673 = vmatpush2.msra.mxu0 0.0
      %674 = vmatprep.subr.mxu0 0.0
      %675 = vmatpush2.msra.mxu0 0.0
      %676 = vmatprep.subr.mxu0 0.0
      %677 = vmatpush2.msra.mxu0 0.0
      %678 = vmatprep.subr.mxu0 0.0
      %679 = vmatpush2.msra.mxu0 0.0
      %680 = vmatprep.subr.mxu0 0.0
      %681 = vmatpush2.msra.mxu0 0.0
      %682 = vmatprep.subr.mxu0 0.0
      %683 = vmatpush2.msra.mxu0 0.0
      %684 = vmatprep.subr.mxu0 0.0
      %685 = vmatpush2.msra.mxu0 0.0
      %686 = vmatprep.subr.mxu0 0.0
      %687 = vmatpush2.msra.mxu0 0.0
      %688 = vmatprep.subr.mxu0 0.0
      %689 = vmatpush2.msra.mxu0 0.0
      %690 = vmatprep.mubr.f32.mxu0 0.0
      %691 = vmatmul.mubr.f32.gmra.mxu0 %v538
      %v692 = vpop.f32.mrf.mxu0
      %v693 = vadd.f32 0.0, %v692
      %v694 = vpop.f32.mrf.mxu0
      %695 = vmatprep.mubr.f32.mxu0 0.0
      %696 = vmatmul.mubr.f32.gmra.mxu0 %v541
      %v697 = vpop.f32.mrf.mxu0
      %v698 = vadd.f32 0.0, %v697
      %v699 = vpop.f32.mrf.mxu0
      %700 = vdwg.mxu0
      %v701 = vadd.f32 %v435, %v616
      %v702 = vadd.f32 %v437, %v618
      %v703 = vadd.f32 %v512, %v693
      %v704 = vadd.f32 %v441, %v622
      %v705 = vadd.f32 %v443, %v624
      %v706 = vadd.f32 %v517, %v698
      %v707 = vld [vmem:[%s165] sm:$0xff]
      %v708 = vld [vmem:[%s165 + $0x8] sm:$0xf]
      %s709 = scalar_lea.vmem %s1, 48
      %v710 = vld [vmem:[%s709] sm:$0xff]
      %v711 = vld [vmem:[%s709 + $0x8] sm:$0xff]
      %v714 = vcombine.high %v707, %v707
      %715 = vrot.lane.b32.xlu0 %v707, 110
      %v716 = vpop.permute.xlu0 %715
      %717 = vrot.lane.b32.xlu0 %v714, 110
      %v718 = vpop.permute.xlu0 %717
      %719 = vrot.lane.b32.xlu0 %v708, 110
      %v720 = vpop.permute.xlu0 %719
      %vm721 = vcmask 900096
      %v722 = vsel %vm721, %v716, %v718
      %v723 = vsel %vm721, %v718, %v720
      %v725 = vsel %vm190, %v710, 0
      %v728 = vsel %vm190, %v711, 0
      %v730 = vsel %vm197, %v722, 0
      %v732 = vsel %vm197, %v723, 0
      %v734 = vsel %vm197, %v720, 0
      %736 = vmatprep.subr.mxu0 0.0
      %737 = vmatpush1.msra.mxu0 0.0
      %738 = vmatprep.subr.mxu0 0.0
      %739 = vmatpush1.msra.mxu0 0.0
      %740 = vmatprep.subr.mxu0 0.0
      %741 = vmatpush1.msra.mxu0 0.0
      %742 = vmatprep.subr.mxu0 0.0
      %743 = vmatpush1.msra.mxu0 0.0
      %744 = vmatprep.subr.mxu0 0.0
      %745 = vmatpush1.msra.mxu0 0.0
      %746 = vmatprep.subr.mxu0 0.0
      %747 = vmatpush1.msra.mxu0 0.0
      %748 = vmatprep.subr.mxu0 0.0
      %749 = vmatpush1.msra.mxu0 0.0
      %750 = vmatprep.subr.mxu0 0.0
      %751 = vmatpush1.msra.mxu0 0.0
      %752 = vmatprep.subr.mxu0 0.0
      %753 = vmatpush1.msra.mxu0 0.0
      %754 = vmatprep.subr.mxu0 0.0
      %755 = vmatpush1.msra.mxu0 0.0
      %756 = vmatprep.subr.mxu0 0.0
      %757 = vmatpush1.msra.mxu0 0.0
      %758 = vmatprep.subr.mxu0 0.0
      %759 = vmatpush1.msra.mxu0 0.0
      %760 = vmatprep.subr.mxu0 0.0
      %761 = vmatpush1.msra.mxu0 0.0
      %762 = vmatprep.subr.mxu0 0.0
      %763 = vmatpush1.msra.mxu0 0.0
      %764 = vmatprep.subr.mxu0 0.0
      %765 = vmatpush1.msra.mxu0 0.0
      %766 = vmatprep.subr.mxu0 %v732
      %767 = vmatpush1.msra.mxu0 %v730
      %768 = vmatprep.subr.mxu0 0.0
      %769 = vmatpush2.msra.mxu0 0.0
      %770 = vmatprep.subr.mxu0 0.0
      %771 = vmatpush2.msra.mxu0 0.0
      %772 = vmatprep.subr.mxu0 0.0
      %773 = vmatpush2.msra.mxu0 0.0
      %774 = vmatprep.subr.mxu0 0.0
      %775 = vmatpush2.msra.mxu0 0.0
      %776 = vmatprep.subr.mxu0 0.0
      %777 = vmatpush2.msra.mxu0 0.0
      %778 = vmatprep.subr.mxu0 0.0
      %779 = vmatpush2.msra.mxu0 0.0
      %780 = vmatprep.subr.mxu0 0.0
      %781 = vmatpush2.msra.mxu0 0.0
      %782 = vmatprep.subr.mxu0 0.0
      %783 = vmatpush2.msra.mxu0 0.0
      %784 = vmatprep.subr.mxu0 0.0
      %785 = vmatpush2.msra.mxu0 0.0
      %786 = vmatprep.subr.mxu0 0.0
      %787 = vmatpush2.msra.mxu0 0.0
      %788 = vmatprep.subr.mxu0 0.0
      %789 = vmatpush2.msra.mxu0 0.0
      %790 = vmatprep.subr.mxu0 0.0
      %791 = vmatpush2.msra.mxu0 0.0
      %792 = vmatprep.subr.mxu0 0.0
      %793 = vmatpush2.msra.mxu0 0.0
      %794 = vmatprep.subr.mxu0 0.0
      %795 = vmatpush2.msra.mxu0 0.0
      %796 = vmatprep.subr.mxu0 0.0
      %797 = vmatpush2.msra.mxu0 0.0
      %798 = vmatprep.subr.mxu0 0.0
      %799 = vmatpush2.msra.mxu0 0.0
      %800 = vmatprep.mubr.f32.mxu0 0.0
      %801 = vmatmul.mubr.f32.gmra.mxu0 %v725
      %v802 = vpop.f32.mrf.mxu0
      %v803 = vadd.f32 0.0, %v802
      %v804 = vpop.f32.mrf.mxu0
      %v805 = vadd.f32 0.0, %v804
      %806 = vmatprep.mubr.f32.mxu0 0.0
      %807 = vmatmul.mubr.f32.gmra.mxu0 %v728
      %v808 = vpop.f32.mrf.mxu0
      %v809 = vadd.f32 0.0, %v808
      %v810 = vpop.f32.mrf.mxu0
      %v811 = vadd.f32 0.0, %v810
      %812 = vdwg.mxu0
      %813 = vmatprep.subr.mxu0 0.0
      %814 = vmatpush1.msra.mxu0 0.0
      %815 = vmatprep.subr.mxu0 0.0
      %816 = vmatpush1.msra.mxu0 0.0
      %817 = vmatprep.subr.mxu0 0.0
      %818 = vmatpush1.msra.mxu0 0.0
      %819 = vmatprep.subr.mxu0 0.0
      %820 = vmatpush1.msra.mxu0 0.0
      %821 = vmatprep.subr.mxu0 0.0
      %822 = vmatpush1.msra.mxu0 0.0
      %823 = vmatprep.subr.mxu0 0.0
      %824 = vmatpush1.msra.mxu0 0.0
      %825 = vmatprep.subr.mxu0 0.0
      %826 = vmatpush1.msra.mxu0 0.0
      %827 = vmatprep.subr.mxu0 0.0
      %828 = vmatpush1.msra.mxu0 0.0
      %829 = vmatprep.subr.mxu0 0.0
      %830 = vmatpush1.msra.mxu0 0.0
      %831 = vmatprep.subr.mxu0 0.0
      %832 = vmatpush1.msra.mxu0 0.0
      %833 = vmatprep.subr.mxu0 0.0
      %834 = vmatpush1.msra.mxu0 0.0
      %835 = vmatprep.subr.mxu0 0.0
      %836 = vmatpush1.msra.mxu0 0.0
      %837 = vmatprep.subr.mxu0 0.0
      %838 = vmatpush1.msra.mxu0 0.0
      %839 = vmatprep.subr.mxu0 0.0
      %840 = vmatpush1.msra.mxu0 0.0
      %841 = vmatprep.subr.mxu0 0.0
      %842 = vmatpush1.msra.mxu0 0.0
      %843 = vmatprep.subr.mxu0 0.0
      %844 = vmatpush1.msra.mxu0 %v734
      %845 = vmatprep.subr.mxu0 0.0
      %846 = vmatpush2.msra.mxu0 0.0
      %847 = vmatprep.subr.mxu0 0.0
      %848 = vmatpush2.msra.mxu0 0.0
      %849 = vmatprep.subr.mxu0 0.0
      %850 = vmatpush2.msra.mxu0 0.0
      %851 = vmatprep.subr.mxu0 0.0
      %852 = vmatpush2.msra.mxu0 0.0
      %853 = vmatprep.subr.mxu0 0.0
      %854 = vmatpush2.msra.mxu0 0.0
      %855 = vmatprep.subr.mxu0 0.0
      %856 = vmatpush2.msra.mxu0 0.0
      %857 = vmatprep.subr.mxu0 0.0
      %858 = vmatpush2.msra.mxu0 0.0
      %859 = vmatprep.subr.mxu0 0.0
      %860 = vmatpush2.msra.mxu0 0.0
      %861 = vmatprep.subr.mxu0 0.0
      %862 = vmatpush2.msra.mxu0 0.0
      %863 = vmatprep.subr.mxu0 0.0
      %864 = vmatpush2.msra.mxu0 0.0
      %865 = vmatprep.subr.mxu0 0.0
      %866 = vmatpush2.msra.mxu0 0.0
      %867 = vmatprep.subr.mxu0 0.0
      %868 = vmatpush2.msra.mxu0 0.0
      %869 = vmatprep.subr.mxu0 0.0
      %870 = vmatpush2.msra.mxu0 0.0
      %871 = vmatprep.subr.mxu0 0.0
      %872 = vmatpush2.msra.mxu0 0.0
      %873 = vmatprep.subr.mxu0 0.0
      %874 = vmatpush2.msra.mxu0 0.0
      %875 = vmatprep.subr.mxu0 0.0
      %876 = vmatpush2.msra.mxu0 0.0
      %877 = vmatprep.mubr.f32.mxu0 0.0
      %878 = vmatmul.mubr.f32.gmra.mxu0 %v725
      %v879 = vpop.f32.mrf.mxu0
      %v880 = vadd.f32 0.0, %v879
      %v881 = vpop.f32.mrf.mxu0
      %882 = vmatprep.mubr.f32.mxu0 0.0
      %883 = vmatmul.mubr.f32.gmra.mxu0 %v728
      %v884 = vpop.f32.mrf.mxu0
      %v885 = vadd.f32 0.0, %v884
      %v886 = vpop.f32.mrf.mxu0
      %887 = vdwg.mxu0
      %v888 = vadd.f32 %v701, %v803
      %v889 = vadd.f32 %v702, %v805
      %v890 = vadd.f32 %v703, %v880
      %v891 = vadd.f32 %v704, %v809
      %v892 = vadd.f32 %v705, %v811
      %v893 = vadd.f32 %v706, %v885
      %v894 = vld [vmem:[%s165] sm:$0xff]
      %v895 = vld [vmem:[%s165 + $0x8] sm:$0xf]
      %s896 = scalar_lea.vmem %s1, 64
      %v897 = vld [vmem:[%s896] sm:$0xff]
      %v898 = vld [vmem:[%s896 + $0x8] sm:$0xff]
      %v901 = vcombine.high %v894, %v894
      %902 = vrot.lane.b32.xlu0 %v894, 109
      %v903 = vpop.permute.xlu0 %902
      %904 = vrot.lane.b32.xlu0 %v901, 109
      %v905 = vpop.permute.xlu0 %904
      %906 = vrot.lane.b32.xlu0 %v895, 109
      %v907 = vpop.permute.xlu0 %906
      %vm908 = vcmask 891904
      %v909 = vsel %vm908, %v903, %v905
      %v910 = vsel %vm908, %v905, %v907
      %v912 = vsel %vm190, %v897, 0
      %v915 = vsel %vm190, %v898, 0
      %v917 = vsel %vm197, %v909, 0
      %v919 = vsel %vm197, %v910, 0
      %v921 = vsel %vm197, %v907, 0
      %923 = vmatprep.subr.mxu0 0.0
      %924 = vmatpush1.msra.mxu0 0.0
      %925 = vmatprep.subr.mxu0 0.0
      %926 = vmatpush1.msra.mxu0 0.0
      %927 = vmatprep.subr.mxu0 0.0
      %928 = vmatpush1.msra.mxu0 0.0
      %929 = vmatprep.subr.mxu0 0.0
      %930 = vmatpush1.msra.mxu0 0.0
      %931 = vmatprep.subr.mxu0 0.0
      %932 = vmatpush1.msra.mxu0 0.0
      %933 = vmatprep.subr.mxu0 0.0
      %934 = vmatpush1.msra.mxu0 0.0
      %935 = vmatprep.subr.mxu0 0.0
      %936 = vmatpush1.msra.mxu0 0.0
      %937 = vmatprep.subr.mxu0 0.0
      %938 = vmatpush1.msra.mxu0 0.0
      %939 = vmatprep.subr.mxu0 0.0
      %940 = vmatpush1.msra.mxu0 0.0
      %941 = vmatprep.subr.mxu0 0.0
      %942 = vmatpush1.msra.mxu0 0.0
      %943 = vmatprep.subr.mxu0 0.0
      %944 = vmatpush1.msra.mxu0 0.0
      %945 = vmatprep.subr.mxu0 0.0
      %946 = vmatpush1.msra.mxu0 0.0
      %947 = vmatprep.subr.mxu0 0.0
      %948 = vmatpush1.msra.mxu0 0.0
      %949 = vmatprep.subr.mxu0 0.0
      %950 = vmatpush1.msra.mxu0 0.0
      %951 = vmatprep.subr.mxu0 0.0
      %952 = vmatpush1.msra.mxu0 0.0
      %953 = vmatprep.subr.mxu0 %v919
      %954 = vmatpush1.msra.mxu0 %v917
      %955 = vmatprep.subr.mxu0 0.0
      %956 = vmatpush2.msra.mxu0 0.0
      %957 = vmatprep.subr.mxu0 0.0
      %958 = vmatpush2.msra.mxu0 0.0
      %959 = vmatprep.subr.mxu0 0.0
      %960 = vmatpush2.msra.mxu0 0.0
      %961 = vmatprep.subr.mxu0 0.0
      %962 = vmatpush2.msra.mxu0 0.0
      %963 = vmatprep.subr.mxu0 0.0
      %964 = vmatpush2.msra.mxu0 0.0
      %965 = vmatprep.subr.mxu0 0.0
      %966 = vmatpush2.msra.mxu0 0.0
      %967 = vmatprep.subr.mxu0 0.0
      %968 = vmatpush2.msra.mxu0 0.0
      %969 = vmatprep.subr.mxu0 0.0
      %970 = vmatpush2.msra.mxu0 0.0
      %971 = vmatprep.subr.mxu0 0.0
      %972 = vmatpush2.msra.mxu0 0.0
      %973 = vmatprep.subr.mxu0 0.0
      %974 = vmatpush2.msra.mxu0 0.0
      %975 = vmatprep.subr.mxu0 0.0
      %976 = vmatpush2.msra.mxu0 0.0
      %977 = vmatprep.subr.mxu0 0.0
      %978 = vmatpush2.msra.mxu0 0.0
      %979 = vmatprep.subr.mxu0 0.0
      %980 = vmatpush2.msra.mxu0 0.0
      %981 = vmatprep.subr.mxu0 0.0
      %982 = vmatpush2.msra.mxu0 0.0
      %983 = vmatprep.subr.mxu0 0.0
      %984 = vmatpush2.msra.mxu0 0.0
      %985 = vmatprep.subr.mxu0 0.0
      %986 = vmatpush2.msra.mxu0 0.0
      %987 = vmatprep.mubr.f32.mxu0 0.0
      %988 = vmatmul.mubr.f32.gmra.mxu0 %v912
      %v989 = vpop.f32.mrf.mxu0
      %v990 = vadd.f32 0.0, %v989
      %v991 = vpop.f32.mrf.mxu0
      %v992 = vadd.f32 0.0, %v991
      %993 = vmatprep.mubr.f32.mxu0 0.0
      %994 = vmatmul.mubr.f32.gmra.mxu0 %v915
      %v995 = vpop.f32.mrf.mxu0
      %v996 = vadd.f32 0.0, %v995
      %v997 = vpop.f32.mrf.mxu0
      %v998 = vadd.f32 0.0, %v997
      %999 = vdwg.mxu0
      %1000 = vmatprep.subr.mxu0 0.0
      %1001 = vmatpush1.msra.mxu0 0.0
      %1002 = vmatprep.subr.mxu0 0.0
      %1003 = vmatpush1.msra.mxu0 0.0
      %1004 = vmatprep.subr.mxu0 0.0
      %1005 = vmatpush1.msra.mxu0 0.0
      %1006 = vmatprep.subr.mxu0 0.0
      %1007 = vmatpush1.msra.mxu0 0.0
      %1008 = vmatprep.subr.mxu0 0.0
      %1009 = vmatpush1.msra.mxu0 0.0
      %1010 = vmatprep.subr.mxu0 0.0
      %1011 = vmatpush1.msra.mxu0 0.0
      %1012 = vmatprep.subr.mxu0 0.0
      %1013 = vmatpush1.msra.mxu0 0.0
      %1014 = vmatprep.subr.mxu0 0.0
      %1015 = vmatpush1.msra.mxu0 0.0
      %1016 = vmatprep.subr.mxu0 0.0
      %1017 = vmatpush1.msra.mxu0 0.0
      %1018 = vmatprep.subr.mxu0 0.0
      %1019 = vmatpush1.msra.mxu0 0.0
      %1020 = vmatprep.subr.mxu0 0.0
      %1021 = vmatpush1.msra.mxu0 0.0
      %1022 = vmatprep.subr.mxu0 0.0
      %1023 = vmatpush1.msra.mxu0 0.0
      %1024 = vmatprep.subr.mxu0 0.0
      %1025 = vmatpush1.msra.mxu0 0.0
      %1026 = vmatprep.subr.mxu0 0.0
      %1027 = vmatpush1.msra.mxu0 0.0
      %1028 = vmatprep.subr.mxu0 0.0
      %1029 = vmatpush1.msra.mxu0 0.0
      %1030 = vmatprep.subr.mxu0 0.0
      %1031 = vmatpush1.msra.mxu0 %v921
      %1032 = vmatprep.subr.mxu0 0.0
      %1033 = vmatpush2.msra.mxu0 0.0
      %1034 = vmatprep.subr.mxu0 0.0
      %1035 = vmatpush2.msra.mxu0 0.0
      %1036 = vmatprep.subr.mxu0 0.0
      %1037 = vmatpush2.msra.mxu0 0.0
      %1038 = vmatprep.subr.mxu0 0.0
      %1039 = vmatpush2.msra.mxu0 0.0
      %1040 = vmatprep.subr.mxu0 0.0
      %1041 = vmatpush2.msra.mxu0 0.0
      %1042 = vmatprep.subr.mxu0 0.0
      %1043 = vmatpush2.msra.mxu0 0.0
      %1044 = vmatprep.subr.mxu0 0.0
      %1045 = vmatpush2.msra.mxu0 0.0
      %1046 = vmatprep.subr.mxu0 0.0
      %1047 = vmatpush2.msra.mxu0 0.0
      %1048 = vmatprep.subr.mxu0 0.0
      %1049 = vmatpush2.msra.mxu0 0.0
      %1050 = vmatprep.subr.mxu0 0.0
      %1051 = vmatpush2.msra.mxu0 0.0
      %1052 = vmatprep.subr.mxu0 0.0
      %1053 = vmatpush2.msra.mxu0 0.0
      %1054 = vmatprep.subr.mxu0 0.0
      %1055 = vmatpush2.msra.mxu0 0.0
      %1056 = vmatprep.subr.mxu0 0.0
      %1057 = vmatpush2.msra.mxu0 0.0
      %1058 = vmatprep.subr.mxu0 0.0
      %1059 = vmatpush2.msra.mxu0 0.0
      %1060 = vmatprep.subr.mxu0 0.0
      %1061 = vmatpush2.msra.mxu0 0.0
      %1062 = vmatprep.subr.mxu0 0.0
      %1063 = vmatpush2.msra.mxu0 0.0
      %1064 = vmatprep.mubr.f32.mxu0 0.0
      %1065 = vmatmul.mubr.f32.gmra.mxu0 %v912
      %v1066 = vpop.f32.mrf.mxu0
      %v1067 = vadd.f32 0.0, %v1066
      %v1068 = vpop.f32.mrf.mxu0
      %1069 = vmatprep.mubr.f32.mxu0 0.0
      %1070 = vmatmul.mubr.f32.gmra.mxu0 %v915
      %v1071 = vpop.f32.mrf.mxu0
      %v1072 = vadd.f32 0.0, %v1071
      %v1073 = vpop.f32.mrf.mxu0
      %1074 = vdwg.mxu0
      %v1075 = vadd.f32 %v888, %v990
      %v1076 = vadd.f32 %v889, %v992
      %v1077 = vadd.f32 %v890, %v1067
      %v1078 = vadd.f32 %v891, %v996
      %v1079 = vadd.f32 %v892, %v998
      %v1080 = vadd.f32 %v893, %v1072
      %v1081 = vld [vmem:[%s165] sm:$0xff]
      %v1082 = vld [vmem:[%s165 + $0x8] sm:$0xf]
      %s1083 = scalar_lea.vmem %s1, 80
      %v1084 = vld [vmem:[%s1083] sm:$0xff]
      %v1085 = vld [vmem:[%s1083 + $0x8] sm:$0xff]
      %v1088 = vcombine.high %v1081, %v1081
      %1089 = vrot.lane.b32.xlu0 %v1081, 108
      %v1090 = vpop.permute.xlu0 %1089
      %1091 = vrot.lane.b32.xlu0 %v1088, 108
      %v1092 = vpop.permute.xlu0 %1091
      %1093 = vrot.lane.b32.xlu0 %v1082, 108
      %v1094 = vpop.permute.xlu0 %1093
      %vm1095 = vcmask 883712
      %v1096 = vsel %vm1095, %v1090, %v1092
      %v1097 = vsel %vm1095, %v1092, %v1094
      %v1099 = vsel %vm190, %v1084, 0
      %v1102 = vsel %vm190, %v1085, 0
      %v1104 = vsel %vm197, %v1096, 0
      %v1106 = vsel %vm197, %v1097, 0
      %v1108 = vsel %vm197, %v1094, 0
      %1110 = vmatprep.subr.mxu0 0.0
      %1111 = vmatpush1.msra.mxu0 0.0
      %1112 = vmatprep.subr.mxu0 0.0
      %1113 = vmatpush1.msra.mxu0 0.0
      %1114 = vmatprep.subr.mxu0 0.0
      %1115 = vmatpush1.msra.mxu0 0.0
      %1116 = vmatprep.subr.mxu0 0.0
      %1117 = vmatpush1.msra.mxu0 0.0
      %1118 = vmatprep.subr.mxu0 0.0
      %1119 = vmatpush1.msra.mxu0 0.0
      %1120 = vmatprep.subr.mxu0 0.0
      %1121 = vmatpush1.msra.mxu0 0.0
      %1122 = vmatprep.subr.mxu0 0.0
      %1123 = vmatpush1.msra.mxu0 0.0
      %1124 = vmatprep.subr.mxu0 0.0
      %1125 = vmatpush1.msra.mxu0 0.0
      %1126 = vmatprep.subr.mxu0 0.0
      %1127 = vmatpush1.msra.mxu0 0.0
      %1128 = vmatprep.subr.mxu0 0.0
      %1129 = vmatpush1.msra.mxu0 0.0
      %1130 = vmatprep.subr.mxu0 0.0
      %1131 = vmatpush1.msra.mxu0 0.0
      %1132 = vmatprep.subr.mxu0 0.0
      %1133 = vmatpush1.msra.mxu0 0.0
      %1134 = vmatprep.subr.mxu0 0.0
      %1135 = vmatpush1.msra.mxu0 0.0
      %1136 = vmatprep.subr.mxu0 0.0
      %1137 = vmatpush1.msra.mxu0 0.0
      %1138 = vmatprep.subr.mxu0 0.0
      %1139 = vmatpush1.msra.mxu0 0.0
      %1140 = vmatprep.subr.mxu0 %v1106
      %1141 = vmatpush1.msra.mxu0 %v1104
      %1142 = vmatprep.subr.mxu0 0.0
      %1143 = vmatpush2.msra.mxu0 0.0
      %1144 = vmatprep.subr.mxu0 0.0
      %1145 = vmatpush2.msra.mxu0 0.0
      %1146 = vmatprep.subr.mxu0 0.0
      %1147 = vmatpush2.msra.mxu0 0.0
      %1148 = vmatprep.subr.mxu0 0.0
      %1149 = vmatpush2.msra.mxu0 0.0
      %1150 = vmatprep.subr.mxu0 0.0
      %1151 = vmatpush2.msra.mxu0 0.0
      %1152 = vmatprep.subr.mxu0 0.0
      %1153 = vmatpush2.msra.mxu0 0.0
      %1154 = vmatprep.subr.mxu0 0.0
      %1155 = vmatpush2.msra.mxu0 0.0
      %1156 = vmatprep.subr.mxu0 0.0
      %1157 = vmatpush2.msra.mxu0 0.0
      %1158 = vmatprep.subr.mxu0 0.0
      %1159 = vmatpush2.msra.mxu0 0.0
      %1160 = vmatprep.subr.mxu0 0.0
      %1161 = vmatpush2.msra.mxu0 0.0
      %1162 = vmatprep.subr.mxu0 0.0
      %1163 = vmatpush2.msra.mxu0 0.0
      %1164 = vmatprep.subr.mxu0 0.0
      %1165 = vmatpush2.msra.mxu0 0.0
      %1166 = vmatprep.subr.mxu0 0.0
      %1167 = vmatpush2.msra.mxu0 0.0
      %1168 = vmatprep.subr.mxu0 0.0
      %1169 = vmatpush2.msra.mxu0 0.0
      %1170 = vmatprep.subr.mxu0 0.0
      %1171 = vmatpush2.msra.mxu0 0.0
      %1172 = vmatprep.subr.mxu0 0.0
      %1173 = vmatpush2.msra.mxu0 0.0
      %1174 = vmatprep.mubr.f32.mxu0 0.0
      %1175 = vmatmul.mubr.f32.gmra.mxu0 %v1099
      %v1176 = vpop.f32.mrf.mxu0
      %v1177 = vadd.f32 0.0, %v1176
      %v1178 = vpop.f32.mrf.mxu0
      %v1179 = vadd.f32 0.0, %v1178
      %1180 = vmatprep.mubr.f32.mxu0 0.0
      %1181 = vmatmul.mubr.f32.gmra.mxu0 %v1102
      %v1182 = vpop.f32.mrf.mxu0
      %v1183 = vadd.f32 0.0, %v1182
      %v1184 = vpop.f32.mrf.mxu0
      %v1185 = vadd.f32 0.0, %v1184
      %1186 = vdwg.mxu0
      %1187 = vmatprep.subr.mxu0 0.0
      %1188 = vmatpush1.msra.mxu0 0.0
      %1189 = vmatprep.subr.mxu0 0.0
      %1190 = vmatpush1.msra.mxu0 0.0
      %1191 = vmatprep.subr.mxu0 0.0
      %1192 = vmatpush1.msra.mxu0 0.0
      %1193 = vmatprep.subr.mxu0 0.0
      %1194 = vmatpush1.msra.mxu0 0.0
      %1195 = vmatprep.subr.mxu0 0.0
      %1196 = vmatpush1.msra.mxu0 0.0
      %1197 = vmatprep.subr.mxu0 0.0
      %1198 = vmatpush1.msra.mxu0 0.0
      %1199 = vmatprep.subr.mxu0 0.0
      %1200 = vmatpush1.msra.mxu0 0.0
      %1201 = vmatprep.subr.mxu0 0.0
      %1202 = vmatpush1.msra.mxu0 0.0
      %1203 = vmatprep.subr.mxu0 0.0
      %1204 = vmatpush1.msra.mxu0 0.0
      %1205 = vmatprep.subr.mxu0 0.0
      %1206 = vmatpush1.msra.mxu0 0.0
      %1207 = vmatprep.subr.mxu0 0.0
      %1208 = vmatpush1.msra.mxu0 0.0
      %1209 = vmatprep.subr.mxu0 0.0
      %1210 = vmatpush1.msra.mxu0 0.0
      %1211 = vmatprep.subr.mxu0 0.0
      %1212 = vmatpush1.msra.mxu0 0.0
      %1213 = vmatprep.subr.mxu0 0.0
      %1214 = vmatpush1.msra.mxu0 0.0
      %1215 = vmatprep.subr.mxu0 0.0
      %1216 = vmatpush1.msra.mxu0 0.0
      %1217 = vmatprep.subr.mxu0 0.0
      %1218 = vmatpush1.msra.mxu0 %v1108
      %1219 = vmatprep.subr.mxu0 0.0
      %1220 = vmatpush2.msra.mxu0 0.0
      %1221 = vmatprep.subr.mxu0 0.0
      %1222 = vmatpush2.msra.mxu0 0.0
      %1223 = vmatprep.subr.mxu0 0.0
      %1224 = vmatpush2.msra.mxu0 0.0
      %1225 = vmatprep.subr.mxu0 0.0
      %1226 = vmatpush2.msra.mxu0 0.0
      %1227 = vmatprep.subr.mxu0 0.0
      %1228 = vmatpush2.msra.mxu0 0.0
      %1229 = vmatprep.subr.mxu0 0.0
      %1230 = vmatpush2.msra.mxu0 0.0
      %1231 = vmatprep.subr.mxu0 0.0
      %1232 = vmatpush2.msra.mxu0 0.0
      %1233 = vmatprep.subr.mxu0 0.0
      %1234 = vmatpush2.msra.mxu0 0.0
      %1235 = vmatprep.subr.mxu0 0.0
      %1236 = vmatpush2.msra.mxu0 0.0
      %1237 = vmatprep.subr.mxu0 0.0
      %1238 = vmatpush2.msra.mxu0 0.0
      %1239 = vmatprep.subr.mxu0 0.0
      %1240 = vmatpush2.msra.mxu0 0.0
      %1241 = vmatprep.subr.mxu0 0.0
      %1242 = vmatpush2.msra.mxu0 0.0
      %1243 = vmatprep.subr.mxu0 0.0
      %1244 = vmatpush2.msra.mxu0 0.0
      %1245 = vmatprep.subr.mxu0 0.0
      %1246 = vmatpush2.msra.mxu0 0.0
      %1247 = vmatprep.subr.mxu0 0.0
      %1248 = vmatpush2.msra.mxu0 0.0
      %1249 = vmatprep.subr.mxu0 0.0
      %1250 = vmatpush2.msra.mxu0 0.0
      %1251 = vmatprep.mubr.f32.mxu0 0.0
      %1252 = vmatmul.mubr.f32.gmra.mxu0 %v1099
      %v1253 = vpop.f32.mrf.mxu0
      %v1254 = vadd.f32 0.0, %v1253
      %v1255 = vpop.f32.mrf.mxu0
      %1256 = vmatprep.mubr.f32.mxu0 0.0
      %1257 = vmatmul.mubr.f32.gmra.mxu0 %v1102
      %v1258 = vpop.f32.mrf.mxu0
      %v1259 = vadd.f32 0.0, %v1258
      %v1260 = vpop.f32.mrf.mxu0
      %1261 = vdwg.mxu0
      %v1262 = vadd.f32 %v1075, %v1177
      %v1263 = vadd.f32 %v1076, %v1179
      %v1264 = vadd.f32 %v1077, %v1254
      %v1265 = vadd.f32 %v1078, %v1183
      %v1266 = vadd.f32 %v1079, %v1185
      %v1267 = vadd.f32 %v1080, %v1259
      %v1268 = vld [vmem:[%s165] sm:$0xff]
      %v1269 = vld [vmem:[%s165 + $0x8] sm:$0xf]
      %s1270 = scalar_lea.vmem %s1, 96
      %v1271 = vld [vmem:[%s1270] sm:$0xff]
      %v1272 = vld [vmem:[%s1270 + $0x8] sm:$0xff]
      %v1275 = vcombine.high %v1268, %v1268
      %1276 = vrot.lane.b32.xlu0 %v1268, 92
      %v1277 = vpop.permute.xlu0 %1276
      %1278 = vrot.lane.b32.xlu0 %v1275, 92
      %v1279 = vpop.permute.xlu0 %1278
      %1280 = vrot.lane.b32.xlu0 %v1269, 92
      %v1281 = vpop.permute.xlu0 %1280
      %vm1282 = vcmask 752640
      %v1283 = vsel %vm1282, %v1277, %v1279
      %v1284 = vsel %vm1282, %v1279, %v1281
      %v1286 = vsel %vm190, %v1271, 0
      %v1289 = vsel %vm190, %v1272, 0
      %v1291 = vsel %vm197, %v1283, 0
      %v1293 = vsel %vm197, %v1284, 0
      %v1295 = vsel %vm197, %v1281, 0
      %1297 = vmatprep.subr.mxu0 0.0
      %1298 = vmatpush1.msra.mxu0 0.0
      %1299 = vmatprep.subr.mxu0 0.0
      %1300 = vmatpush1.msra.mxu0 0.0
      %1301 = vmatprep.subr.mxu0 0.0
      %1302 = vmatpush1.msra.mxu0 0.0
      %1303 = vmatprep.subr.mxu0 0.0
      %1304 = vmatpush1.msra.mxu0 0.0
      %1305 = vmatprep.subr.mxu0 0.0
      %1306 = vmatpush1.msra.mxu0 0.0
      %1307 = vmatprep.subr.mxu0 0.0
      %1308 = vmatpush1.msra.mxu0 0.0
      %1309 = vmatprep.subr.mxu0 0.0
      %1310 = vmatpush1.msra.mxu0 0.0
      %1311 = vmatprep.subr.mxu0 0.0
      %1312 = vmatpush1.msra.mxu0 0.0
      %1313 = vmatprep.subr.mxu0 0.0
      %1314 = vmatpush1.msra.mxu0 0.0
      %1315 = vmatprep.subr.mxu0 0.0
      %1316 = vmatpush1.msra.mxu0 0.0
      %1317 = vmatprep.subr.mxu0 0.0
      %1318 = vmatpush1.msra.mxu0 0.0
      %1319 = vmatprep.subr.mxu0 0.0
      %1320 = vmatpush1.msra.mxu0 0.0
      %1321 = vmatprep.subr.mxu0 0.0
      %1322 = vmatpush1.msra.mxu0 0.0
      %1323 = vmatprep.subr.mxu0 0.0
      %1324 = vmatpush1.msra.mxu0 0.0
      %1325 = vmatprep.subr.mxu0 0.0
      %1326 = vmatpush1.msra.mxu0 0.0
      %1327 = vmatprep.subr.mxu0 %v1293
      %1328 = vmatpush1.msra.mxu0 %v1291
      %1329 = vmatprep.subr.mxu0 0.0
      %1330 = vmatpush2.msra.mxu0 0.0
      %1331 = vmatprep.subr.mxu0 0.0
      %1332 = vmatpush2.msra.mxu0 0.0
      %1333 = vmatprep.subr.mxu0 0.0
      %1334 = vmatpush2.msra.mxu0 0.0
      %1335 = vmatprep.subr.mxu0 0.0
      %1336 = vmatpush2.msra.mxu0 0.0
      %1337 = vmatprep.subr.mxu0 0.0
      %1338 = vmatpush2.msra.mxu0 0.0
      %1339 = vmatprep.subr.mxu0 0.0
      %1340 = vmatpush2.msra.mxu0 0.0
      %1341 = vmatprep.subr.mxu0 0.0
      %1342 = vmatpush2.msra.mxu0 0.0
      %1343 = vmatprep.subr.mxu0 0.0
      %1344 = vmatpush2.msra.mxu0 0.0
      %1345 = vmatprep.subr.mxu0 0.0
      %1346 = vmatpush2.msra.mxu0 0.0
      %1347 = vmatprep.subr.mxu0 0.0
      %1348 = vmatpush2.msra.mxu0 0.0
      %1349 = vmatprep.subr.mxu0 0.0
      %1350 = vmatpush2.msra.mxu0 0.0
      %1351 = vmatprep.subr.mxu0 0.0
      %1352 = vmatpush2.msra.mxu0 0.0
      %1353 = vmatprep.subr.mxu0 0.0
      %1354 = vmatpush2.msra.mxu0 0.0
      %1355 = vmatprep.subr.mxu0 0.0
      %1356 = vmatpush2.msra.mxu0 0.0
      %1357 = vmatprep.subr.mxu0 0.0
      %1358 = vmatpush2.msra.mxu0 0.0
      %1359 = vmatprep.subr.mxu0 0.0
      %1360 = vmatpush2.msra.mxu0 0.0
      %1361 = vmatprep.mubr.f32.mxu0 0.0
      %1362 = vmatmul.mubr.f32.gmra.mxu0 %v1286
      %v1363 = vpop.f32.mrf.mxu0
      %v1364 = vadd.f32 0.0, %v1363
      %v1365 = vpop.f32.mrf.mxu0
      %v1366 = vadd.f32 0.0, %v1365
      %1367 = vmatprep.mubr.f32.mxu0 0.0
      %1368 = vmatmul.mubr.f32.gmra.mxu0 %v1289
      %v1369 = vpop.f32.mrf.mxu0
      %v1370 = vadd.f32 0.0, %v1369
      %v1371 = vpop.f32.mrf.mxu0
      %v1372 = vadd.f32 0.0, %v1371
      %1373 = vdwg.mxu0
      %1374 = vmatprep.subr.mxu0 0.0
      %1375 = vmatpush1.msra.mxu0 0.0
      %1376 = vmatprep.subr.mxu0 0.0
      %1377 = vmatpush1.msra.mxu0 0.0
      %1378 = vmatprep.subr.mxu0 0.0
      %1379 = vmatpush1.msra.mxu0 0.0
      %1380 = vmatprep.subr.mxu0 0.0
      %1381 = vmatpush1.msra.mxu0 0.0
      %1382 = vmatprep.subr.mxu0 0.0
      %1383 = vmatpush1.msra.mxu0 0.0
      %1384 = vmatprep.subr.mxu0 0.0
      %1385 = vmatpush1.msra.mxu0 0.0
      %1386 = vmatprep.subr.mxu0 0.0
      %1387 = vmatpush1.msra.mxu0 0.0
      %1388 = vmatprep.subr.mxu0 0.0
      %1389 = vmatpush1.msra.mxu0 0.0
      %1390 = vmatprep.subr.mxu0 0.0
      %1391 = vmatpush1.msra.mxu0 0.0
      %1392 = vmatprep.subr.mxu0 0.0
      %1393 = vmatpush1.msra.mxu0 0.0
      %1394 = vmatprep.subr.mxu0 0.0
      %1395 = vmatpush1.msra.mxu0 0.0
      %1396 = vmatprep.subr.mxu0 0.0
      %1397 = vmatpush1.msra.mxu0 0.0
      %1398 = vmatprep.subr.mxu0 0.0
      %1399 = vmatpush1.msra.mxu0 0.0
      %1400 = vmatprep.subr.mxu0 0.0
      %1401 = vmatpush1.msra.mxu0 0.0
      %1402 = vmatprep.subr.mxu0 0.0
      %1403 = vmatpush1.msra.mxu0 0.0
      %1404 = vmatprep.subr.mxu0 0.0
      %1405 = vmatpush1.msra.mxu0 %v1295
      %1406 = vmatprep.subr.mxu0 0.0
      %1407 = vmatpush2.msra.mxu0 0.0
      %1408 = vmatprep.subr.mxu0 0.0
      %1409 = vmatpush2.msra.mxu0 0.0
      %1410 = vmatprep.subr.mxu0 0.0
      %1411 = vmatpush2.msra.mxu0 0.0
      %1412 = vmatprep.subr.mxu0 0.0
      %1413 = vmatpush2.msra.mxu0 0.0
      %1414 = vmatprep.subr.mxu0 0.0
      %1415 = vmatpush2.msra.mxu0 0.0
      %1416 = vmatprep.subr.mxu0 0.0
      %1417 = vmatpush2.msra.mxu0 0.0
      %1418 = vmatprep.subr.mxu0 0.0
      %1419 = vmatpush2.msra.mxu0 0.0
      %1420 = vmatprep.subr.mxu0 0.0
      %1421 = vmatpush2.msra.mxu0 0.0
      %1422 = vmatprep.subr.mxu0 0.0
      %1423 = vmatpush2.msra.mxu0 0.0
      %1424 = vmatprep.subr.mxu0 0.0
      %1425 = vmatpush2.msra.mxu0 0.0
      %1426 = vmatprep.subr.mxu0 0.0
      %1427 = vmatpush2.msra.mxu0 0.0
      %1428 = vmatprep.subr.mxu0 0.0
      %1429 = vmatpush2.msra.mxu0 0.0
      %1430 = vmatprep.subr.mxu0 0.0
      %1431 = vmatpush2.msra.mxu0 0.0
      %1432 = vmatprep.subr.mxu0 0.0
      %1433 = vmatpush2.msra.mxu0 0.0
      %1434 = vmatprep.subr.mxu0 0.0
      %1435 = vmatpush2.msra.mxu0 0.0
      %1436 = vmatprep.subr.mxu0 0.0
      %1437 = vmatpush2.msra.mxu0 0.0
      %1438 = vmatprep.mubr.f32.mxu0 0.0
      %1439 = vmatmul.mubr.f32.gmra.mxu0 %v1286
      %v1440 = vpop.f32.mrf.mxu0
      %v1441 = vadd.f32 0.0, %v1440
      %v1442 = vpop.f32.mrf.mxu0
      %1443 = vmatprep.mubr.f32.mxu0 0.0
      %1444 = vmatmul.mubr.f32.gmra.mxu0 %v1289
      %v1445 = vpop.f32.mrf.mxu0
      %v1446 = vadd.f32 0.0, %v1445
      %v1447 = vpop.f32.mrf.mxu0
      %1448 = vdwg.mxu0
      %v1449 = vadd.f32 %v1262, %v1364
      %v1450 = vadd.f32 %v1263, %v1366
      %v1451 = vadd.f32 %v1264, %v1441
      %v1452 = vadd.f32 %v1265, %v1370
      %v1453 = vadd.f32 %v1266, %v1372
      %v1454 = vadd.f32 %v1267, %v1446
      %v1455 = vld [vmem:[%s165] sm:$0xff]
      %v1456 = vld [vmem:[%s165 + $0x8] sm:$0xf]
      %s1457 = scalar_lea.vmem %s1, 112
      %v1458 = vld [vmem:[%s1457] sm:$0xff]
      %v1459 = vld [vmem:[%s1457 + $0x8] sm:$0xff]
      %v1462 = vcombine.high %v1455, %v1455
      %1463 = vrot.lane.b32.xlu0 %v1455, 91
      %v1464 = vpop.permute.xlu0 %1463
      %1465 = vrot.lane.b32.xlu0 %v1462, 91
      %v1466 = vpop.permute.xlu0 %1465
      %1467 = vrot.lane.b32.xlu0 %v1456, 91
      %v1468 = vpop.permute.xlu0 %1467
      %vm1469 = vcmask 744448
      %v1470 = vsel %vm1469, %v1464, %v1466
      %v1471 = vsel %vm1469, %v1466, %v1468
      %v1473 = vsel %vm190, %v1458, 0
      %v1476 = vsel %vm190, %v1459, 0
      %v1478 = vsel %vm197, %v1470, 0
      %v1480 = vsel %vm197, %v1471, 0
      %v1482 = vsel %vm197, %v1468, 0
      %1484 = vmatprep.subr.mxu0 0.0
      %1485 = vmatpush1.msra.mxu0 0.0
      %1486 = vmatprep.subr.mxu0 0.0
      %1487 = vmatpush1.msra.mxu0 0.0
      %1488 = vmatprep.subr.mxu0 0.0
      %1489 = vmatpush1.msra.mxu0 0.0
      %1490 = vmatprep.subr.mxu0 0.0
      %1491 = vmatpush1.msra.mxu0 0.0
      %1492 = vmatprep.subr.mxu0 0.0
      %1493 = vmatpush1.msra.mxu0 0.0
      %1494 = vmatprep.subr.mxu0 0.0
      %1495 = vmatpush1.msra.mxu0 0.0
      %1496 = vmatprep.subr.mxu0 0.0
      %1497 = vmatpush1.msra.mxu0 0.0
      %1498 = vmatprep.subr.mxu0 0.0
      %1499 = vmatpush1.msra.mxu0 0.0
      %1500 = vmatprep.subr.mxu0 0.0
      %1501 = vmatpush1.msra.mxu0 0.0
      %1502 = vmatprep.subr.mxu0 0.0
      %1503 = vmatpush1.msra.mxu0 0.0
      %1504 = vmatprep.subr.mxu0 0.0
      %1505 = vmatpush1.msra.mxu0 0.0
      %1506 = vmatprep.subr.mxu0 0.0
      %1507 = vmatpush1.msra.mxu0 0.0
      %1508 = vmatprep.subr.mxu0 0.0
      %1509 = vmatpush1.msra.mxu0 0.0
      %1510 = vmatprep.subr.mxu0 0.0
      %1511 = vmatpush1.msra.mxu0 0.0
      %1512 = vmatprep.subr.mxu0 0.0
      %1513 = vmatpush1.msra.mxu0 0.0
      %1514 = vmatprep.subr.mxu0 %v1480
      %1515 = vmatpush1.msra.mxu0 %v1478
      %1516 = vmatprep.subr.mxu0 0.0
      %1517 = vmatpush2.msra.mxu0 0.0
      %1518 = vmatprep.subr.mxu0 0.0
      %1519 = vmatpush2.msra.mxu0 0.0
      %1520 = vmatprep.subr.mxu0 0.0
      %1521 = vmatpush2.msra.mxu0 0.0
      %1522 = vmatprep.subr.mxu0 0.0
      %1523 = vmatpush2.msra.mxu0 0.0
      %1524 = vmatprep.subr.mxu0 0.0
      %1525 = vmatpush2.msra.mxu0 0.0
      %1526 = vmatprep.subr.mxu0 0.0
      %1527 = vmatpush2.msra.mxu0 0.0
      %1528 = vmatprep.subr.mxu0 0.0
      %1529 = vmatpush2.msra.mxu0 0.0
      %1530 = vmatprep.subr.mxu0 0.0
      %1531 = vmatpush2.msra.mxu0 0.0
      %1532 = vmatprep.subr.mxu0 0.0
      %1533 = vmatpush2.msra.mxu0 0.0
      %1534 = vmatprep.subr.mxu0 0.0
      %1535 = vmatpush2.msra.mxu0 0.0
      %1536 = vmatprep.subr.mxu0 0.0
      %1537 = vmatpush2.msra.mxu0 0.0
      %1538 = vmatprep.subr.mxu0 0.0
      %1539 = vmatpush2.msra.mxu0 0.0
      %1540 = vmatprep.subr.mxu0 0.0
      %1541 = vmatpush2.msra.mxu0 0.0
      %1542 = vmatprep.subr.mxu0 0.0
      %1543 = vmatpush2.msra.mxu0 0.0
      %1544 = vmatprep.subr.mxu0 0.0
      %1545 = vmatpush2.msra.mxu0 0.0
      %1546 = vmatprep.subr.mxu0 0.0
      %1547 = vmatpush2.msra.mxu0 0.0
      %1548 = vmatprep.mubr.f32.mxu0 0.0
      %1549 = vmatmul.mubr.f32.gmra.mxu0 %v1473
      %v1550 = vpop.f32.mrf.mxu0
      %v1551 = vadd.f32 0.0, %v1550
      %v1552 = vpop.f32.mrf.mxu0
      %v1553 = vadd.f32 0.0, %v1552
      %1554 = vmatprep.mubr.f32.mxu0 0.0
      %1555 = vmatmul.mubr.f32.gmra.mxu0 %v1476
      %v1556 = vpop.f32.mrf.mxu0
      %v1557 = vadd.f32 0.0, %v1556
      %v1558 = vpop.f32.mrf.mxu0
      %v1559 = vadd.f32 0.0, %v1558
      %1560 = vdwg.mxu0
      %1561 = vmatprep.subr.mxu0 0.0
      %1562 = vmatpush1.msra.mxu0 0.0
      %1563 = vmatprep.subr.mxu0 0.0
      %1564 = vmatpush1.msra.mxu0 0.0
      %1565 = vmatprep.subr.mxu0 0.0
      %1566 = vmatpush1.msra.mxu0 0.0
      %1567 = vmatprep.subr.mxu0 0.0
      %1568 = vmatpush1.msra.mxu0 0.0
      %1569 = vmatprep.subr.mxu0 0.0
      %1570 = vmatpush1.msra.mxu0 0.0
      %1571 = vmatprep.subr.mxu0 0.0
      %1572 = vmatpush1.msra.mxu0 0.0
      %1573 = vmatprep.subr.mxu0 0.0
      %1574 = vmatpush1.msra.mxu0 0.0
      %1575 = vmatprep.subr.mxu0 0.0
      %1576 = vmatpush1.msra.mxu0 0.0
      %1577 = vmatprep.subr.mxu0 0.0
      %1578 = vmatpush1.msra.mxu0 0.0
      %1579 = vmatprep.subr.mxu0 0.0
      %1580 = vmatpush1.msra.mxu0 0.0
      %1581 = vmatprep.subr.mxu0 0.0
      %1582 = vmatpush1.msra.mxu0 0.0
      %1583 = vmatprep.subr.mxu0 0.0
      %1584 = vmatpush1.msra.mxu0 0.0
      %1585 = vmatprep.subr.mxu0 0.0
      %1586 = vmatpush1.msra.mxu0 0.0
      %1587 = vmatprep.subr.mxu0 0.0
      %1588 = vmatpush1.msra.mxu0 0.0
      %1589 = vmatprep.subr.mxu0 0.0
      %1590 = vmatpush1.msra.mxu0 0.0
      %1591 = vmatprep.subr.mxu0 0.0
      %1592 = vmatpush1.msra.mxu0 %v1482
      %1593 = vmatprep.subr.mxu0 0.0
      %1594 = vmatpush2.msra.mxu0 0.0
      %1595 = vmatprep.subr.mxu0 0.0
      %1596 = vmatpush2.msra.mxu0 0.0
      %1597 = vmatprep.subr.mxu0 0.0
      %1598 = vmatpush2.msra.mxu0 0.0
      %1599 = vmatprep.subr.mxu0 0.0
      %1600 = vmatpush2.msra.mxu0 0.0
      %1601 = vmatprep.subr.mxu0 0.0
      %1602 = vmatpush2.msra.mxu0 0.0
      %1603 = vmatprep.subr.mxu0 0.0
      %1604 = vmatpush2.msra.mxu0 0.0
      %1605 = vmatprep.subr.mxu0 0.0
      %1606 = vmatpush2.msra.mxu0 0.0
      %1607 = vmatprep.subr.mxu0 0.0
      %1608 = vmatpush2.msra.mxu0 0.0
      %1609 = vmatprep.subr.mxu0 0.0
      %1610 = vmatpush2.msra.mxu0 0.0
      %1611 = vmatprep.subr.mxu0 0.0
      %1612 = vmatpush2.msra.mxu0 0.0
      %1613 = vmatprep.subr.mxu0 0.0
      %1614 = vmatpush2.msra.mxu0 0.0
      %1615 = vmatprep.subr.mxu0 0.0
      %1616 = vmatpush2.msra.mxu0 0.0
      %1617 = vmatprep.subr.mxu0 0.0
      %1618 = vmatpush2.msra.mxu0 0.0
      %1619 = vmatprep.subr.mxu0 0.0
      %1620 = vmatpush2.msra.mxu0 0.0
      %1621 = vmatprep.subr.mxu0 0.0
      %1622 = vmatpush2.msra.mxu0 0.0
      %1623 = vmatprep.subr.mxu0 0.0
      %1624 = vmatpush2.msra.mxu0 0.0
      %1625 = vmatprep.mubr.f32.mxu0 0.0
      %1626 = vmatmul.mubr.f32.gmra.mxu0 %v1473
      %v1627 = vpop.f32.mrf.mxu0
      %v1628 = vadd.f32 0.0, %v1627
      %v1629 = vpop.f32.mrf.mxu0
      %1630 = vmatprep.mubr.f32.mxu0 0.0
      %1631 = vmatmul.mubr.f32.gmra.mxu0 %v1476
      %v1632 = vpop.f32.mrf.mxu0
      %v1633 = vadd.f32 0.0, %v1632
      %v1634 = vpop.f32.mrf.mxu0
      %1635 = vdwg.mxu0
      %v1636 = vadd.f32 %v1449, %v1551
      %v1637 = vadd.f32 %v1450, %v1553
      %v1638 = vadd.f32 %v1451, %v1628
      %v1639 = vadd.f32 %v1452, %v1557
      %v1640 = vadd.f32 %v1453, %v1559
      %v1641 = vadd.f32 %v1454, %v1633
      %v1642 = vld [vmem:[%s165] sm:$0xff]
      %v1643 = vld [vmem:[%s165 + $0x8] sm:$0xf]
      %s1644 = scalar_lea.vmem %s1, 128
      %v1645 = vld [vmem:[%s1644] sm:$0xff]
      %v1646 = vld [vmem:[%s1644 + $0x8] sm:$0xff]
      %v1649 = vcombine.high %v1642, %v1642
      %1650 = vrot.lane.b32.xlu0 %v1642, 90
      %v1651 = vpop.permute.xlu0 %1650
      %1652 = vrot.lane.b32.xlu0 %v1649, 90
      %v1653 = vpop.permute.xlu0 %1652
      %1654 = vrot.lane.b32.xlu0 %v1643, 90
      %v1655 = vpop.permute.xlu0 %1654
      %vm1656 = vcmask 736256
      %v1657 = vsel %vm1656, %v1651, %v1653
      %v1658 = vsel %vm1656, %v1653, %v1655
      %v1660 = vsel %vm190, %v1645, 0
      %v1663 = vsel %vm190, %v1646, 0
      %v1665 = vsel %vm197, %v1657, 0
      %v1667 = vsel %vm197, %v1658, 0
      %v1669 = vsel %vm197, %v1655, 0
      %1671 = vmatprep.subr.mxu0 0.0
      %1672 = vmatpush1.msra.mxu0 0.0
      %1673 = vmatprep.subr.mxu0 0.0
      %1674 = vmatpush1.msra.mxu0 0.0
      %1675 = vmatprep.subr.mxu0 0.0
      %1676 = vmatpush1.msra.mxu0 0.0
      %1677 = vmatprep.subr.mxu0 0.0
      %1678 = vmatpush1.msra.mxu0 0.0
      %1679 = vmatprep.subr.mxu0 0.0
      %1680 = vmatpush1.msra.mxu0 0.0
      %1681 = vmatprep.subr.mxu0 0.0
      %1682 = vmatpush1.msra.mxu0 0.0
      %1683 = vmatprep.subr.mxu0 0.0
      %1684 = vmatpush1.msra.mxu0 0.0
      %1685 = vmatprep.subr.mxu0 0.0
      %1686 = vmatpush1.msra.mxu0 0.0
      %1687 = vmatprep.subr.mxu0 0.0
      %1688 = vmatpush1.msra.mxu0 0.0
      %1689 = vmatprep.subr.mxu0 0.0
      %1690 = vmatpush1.msra.mxu0 0.0
      %1691 = vmatprep.subr.mxu0 0.0
      %1692 = vmatpush1.msra.mxu0 0.0
      %1693 = vmatprep.subr.mxu0 0.0
      %1694 = vmatpush1.msra.mxu0 0.0
      %1695 = vmatprep.subr.mxu0 0.0
      %1696 = vmatpush1.msra.mxu0 0.0
      %1697 = vmatprep.subr.mxu0 0.0
      %1698 = vmatpush1.msra.mxu0 0.0
      %1699 = vmatprep.subr.mxu0 0.0
      %1700 = vmatpush1.msra.mxu0 0.0
      %1701 = vmatprep.subr.mxu0 %v1667
      %1702 = vmatpush1.msra.mxu0 %v1665
      %1703 = vmatprep.subr.mxu0 0.0
      %1704 = vmatpush2.msra.mxu0 0.0
      %1705 = vmatprep.subr.mxu0 0.0
      %1706 = vmatpush2.msra.mxu0 0.0
      %1707 = vmatprep.subr.mxu0 0.0
      %1708 = vmatpush2.msra.mxu0 0.0
      %1709 = vmatprep.subr.mxu0 0.0
      %1710 = vmatpush2.msra.mxu0 0.0
      %1711 = vmatprep.subr.mxu0 0.0
      %1712 = vmatpush2.msra.mxu0 0.0
      %1713 = vmatprep.subr.mxu0 0.0
      %1714 = vmatpush2.msra.mxu0 0.0
      %1715 = vmatprep.subr.mxu0 0.0
      %1716 = vmatpush2.msra.mxu0 0.0
      %1717 = vmatprep.subr.mxu0 0.0
      %1718 = vmatpush2.msra.mxu0 0.0
      %1719 = vmatprep.subr.mxu0 0.0
      %1720 = vmatpush2.msra.mxu0 0.0
      %1721 = vmatprep.subr.mxu0 0.0
      %1722 = vmatpush2.msra.mxu0 0.0
      %1723 = vmatprep.subr.mxu0 0.0
      %1724 = vmatpush2.msra.mxu0 0.0
      %1725 = vmatprep.subr.mxu0 0.0
      %1726 = vmatpush2.msra.mxu0 0.0
      %1727 = vmatprep.subr.mxu0 0.0
      %1728 = vmatpush2.msra.mxu0 0.0
      %1729 = vmatprep.subr.mxu0 0.0
      %1730 = vmatpush2.msra.mxu0 0.0
      %1731 = vmatprep.subr.mxu0 0.0
      %1732 = vmatpush2.msra.mxu0 0.0
      %1733 = vmatprep.subr.mxu0 0.0
      %1734 = vmatpush2.msra.mxu0 0.0
      %1735 = vmatprep.mubr.f32.mxu0 0.0
      %1736 = vmatmul.mubr.f32.gmra.mxu0 %v1660
      %v1737 = vpop.f32.mrf.mxu0
      %v1738 = vadd.f32 0.0, %v1737
      %v1739 = vpop.f32.mrf.mxu0
      %v1740 = vadd.f32 0.0, %v1739
      %1741 = vmatprep.mubr.f32.mxu0 0.0
      %1742 = vmatmul.mubr.f32.gmra.mxu0 %v1663
      %v1743 = vpop.f32.mrf.mxu0
      %v1744 = vadd.f32 0.0, %v1743
      %v1745 = vpop.f32.mrf.mxu0
      %v1746 = vadd.f32 0.0, %v1745
      %1747 = vdwg.mxu0
      %1748 = vmatprep.subr.mxu0 0.0
      %1749 = vmatpush1.msra.mxu0 0.0
      %1750 = vmatprep.subr.mxu0 0.0
      %1751 = vmatpush1.msra.mxu0 0.0
      %1752 = vmatprep.subr.mxu0 0.0
      %1753 = vmatpush1.msra.mxu0 0.0
      %1754 = vmatprep.subr.mxu0 0.0
      %1755 = vmatpush1.msra.mxu0 0.0
      %1756 = vmatprep.subr.mxu0 0.0
      %1757 = vmatpush1.msra.mxu0 0.0
      %1758 = vmatprep.subr.mxu0 0.0
      %1759 = vmatpush1.msra.mxu0 0.0
      %1760 = vmatprep.subr.mxu0 0.0
      %1761 = vmatpush1.msra.mxu0 0.0
      %1762 = vmatprep.subr.mxu0 0.0
      %1763 = vmatpush1.msra.mxu0 0.0
      %1764 = vmatprep.subr.mxu0 0.0
      %1765 = vmatpush1.msra.mxu0 0.0
      %1766 = vmatprep.subr.mxu0 0.0
      %1767 = vmatpush1.msra.mxu0 0.0
      %1768 = vmatprep.subr.mxu0 0.0
      %1769 = vmatpush1.msra.mxu0 0.0
      %1770 = vmatprep.subr.mxu0 0.0
      %1771 = vmatpush1.msra.mxu0 0.0
      %1772 = vmatprep.subr.mxu0 0.0
      %1773 = vmatpush1.msra.mxu0 0.0
      %1774 = vmatprep.subr.mxu0 0.0
      %1775 = vmatpush1.msra.mxu0 0.0
      %1776 = vmatprep.subr.mxu0 0.0
      %1777 = vmatpush1.msra.mxu0 0.0
      %1778 = vmatprep.subr.mxu0 0.0
      %1779 = vmatpush1.msra.mxu0 %v1669
      %1780 = vmatprep.subr.mxu0 0.0
      %1781 = vmatpush2.msra.mxu0 0.0
      %1782 = vmatprep.subr.mxu0 0.0
      %1783 = vmatpush2.msra.mxu0 0.0
      %1784 = vmatprep.subr.mxu0 0.0
      %1785 = vmatpush2.msra.mxu0 0.0
      %1786 = vmatprep.subr.mxu0 0.0
      %1787 = vmatpush2.msra.mxu0 0.0
      %1788 = vmatprep.subr.mxu0 0.0
      %1789 = vmatpush2.msra.mxu0 0.0
      %1790 = vmatprep.subr.mxu0 0.0
      %1791 = vmatpush2.msra.mxu0 0.0
      %1792 = vmatprep.subr.mxu0 0.0
      %1793 = vmatpush2.msra.mxu0 0.0
      %1794 = vmatprep.subr.mxu0 0.0
      %1795 = vmatpush2.msra.mxu0 0.0
      %1796 = vmatprep.subr.mxu0 0.0
      %1797 = vmatpush2.msra.mxu0 0.0
      %1798 = vmatprep.subr.mxu0 0.0
      %1799 = vmatpush2.msra.mxu0 0.0
      %1800 = vmatprep.subr.mxu0 0.0
      %1801 = vmatpush2.msra.mxu0 0.0
      %1802 = vmatprep.subr.mxu0 0.0
      %1803 = vmatpush2.msra.mxu0 0.0
      %1804 = vmatprep.subr.mxu0 0.0
      %1805 = vmatpush2.msra.mxu0 0.0
      %1806 = vmatprep.subr.mxu0 0.0
      %1807 = vmatpush2.msra.mxu0 0.0
      %1808 = vmatprep.subr.mxu0 0.0
      %1809 = vmatpush2.msra.mxu0 0.0
      %1810 = vmatprep.subr.mxu0 0.0
      %1811 = vmatpush2.msra.mxu0 0.0
      %1812 = vmatprep.mubr.f32.mxu0 0.0
      %1813 = vmatmul.mubr.f32.gmra.mxu0 %v1660
      %v1814 = vpop.f32.mrf.mxu0
      %v1815 = vadd.f32 0.0, %v1814
      %v1816 = vpop.f32.mrf.mxu0
      %1817 = vmatprep.mubr.f32.mxu0 0.0
      %1818 = vmatmul.mubr.f32.gmra.mxu0 %v1663
      %v1819 = vpop.f32.mrf.mxu0
      %v1820 = vadd.f32 0.0, %v1819
      %v1821 = vpop.f32.mrf.mxu0
      %1822 = vdwg.mxu0
      %v1823 = vadd.f32 %v1636, %v1738
      %v1824 = vadd.f32 %v1637, %v1740
      %v1825 = vadd.f32 %v1638, %v1815
      %v1826 = vadd.f32 %v1639, %v1744
      %v1827 = vadd.f32 %v1640, %v1746
      %v1828 = vadd.f32 %v1641, %v1820
      %v1829 = vld [vmem:[%s2] sm:$0xff]
      %v1830 = vld [vmem:[%s2 + $0x8] sm:$0xff]
      %1832 = vset.pattern.permute.xlu0 0
      %1833 = vperm.xlu0 %1832, %v1829
      %v1834 = vpop.permute.xlu0 %1833
      %1837 = vset.pattern.permute.xlu0 0
      %1838 = vperm.xlu0 %1837, %v1830
      %v1839 = vpop.permute.xlu0 %1838
      %v1841 = vadd.f32 %v1823, %v1834
      %v1842 = vadd.f32 %v1824, %v1834
      %v1843 = vadd.f32 %v1825, %v1834
      %v1844 = vadd.f32 %v1826, %v1839
      %v1845 = vadd.f32 %v1827, %v1839
      %v1846 = vadd.f32 %v1828, %v1839
      %v1847 = vxor.u32 %v1844, 2147483648
      %v1848 = vxor.u32 %v1845, 2147483648
      %v1849 = vxor.u32 %v1846, 2147483648
      %v1850 = vmul.f32 %v1847, 1.442695
      %v1851 = vpow.pop %v1850
      %v1852 = vmul.f32 %v1848, 1.442695
      %v1853 = vpow.pop %v1852
      %v1854 = vmul.f32 %v1849, 1.442695
      %v1855 = vpow.pop %v1854
      %v1856 = vadd.f32 %v1851, 1.0
      %v1857 = vadd.f32 %v1853, 1.0
      %v1858 = vadd.f32 %v1855, 1.0
      %v1859 = vrcp.pop %v1856
      %v1860 = vmul.f32 1.0, %v1859
      %v1861 = vrcp.pop %v1857
      %v1862 = vmul.f32 1.0, %v1861
      %v1863 = vrcp.pop %v1858
      %v1864 = vmul.f32 1.0, %v1863
      %v1865 = vmul.f32 %v1841, %v1860
      %v1866 = vmul.f32 %v1842, %v1862
      %v1867 = vmul.f32 %v1843, %v1864
      %1868 = vst [vmem:[%s170] sm:$0xff] %v1865
      %1869 = vst [vmem:[%s170 + $0x8] sm:$0xff] %v1866
      %vm1870 = vcmask 261120
      %1871 = vst.msk [vmem:[%s170 + $0x10] sm:$0xff] %vm1870, %v1867
      %p1872 = scmp.lt.s32.totalorder %s14, 1
      %s1873 = scalar_select %p1872, %s14, 1
      %s1874 = smul.addr %s1873, 3
      %s1875 = smul.addr %s1874, 8
      %s1876 = scalar_lea.vmem %s3, %s1875
      // Predicated region
      $region33: #{gated_conv2d.1} parent=31 // pred_check
        %p1877 = pneg %p100
      $region34: #{gated_conv2d.1} parent=31 // pred_check_branch
        %1879 = sbr.rel (%p1877) target = $region36
      $region35: #{gated_conv2d.1} parent=31 // pred_region
        _
      $region36: #{gated_conv2d.1} parent=31 // pred_fallthru
        _
    $region32: #{gated_conv2d.1} parent=5 // pred_fallthru
      _
    %p1880 = scmp.le.s32.totalorder 2, %s9
    // Predicated region
    $region37: #{gated_conv2d.1} parent=5 // pred_check
      %p1881 = pneg %p1880
    $region38: #{gated_conv2d.1} parent=5 // pred_check_branch
      %1883 = sbr.rel (%p1881) target = $region40
    $region39: #{gated_conv2d.1} parent=5 // pred_region
      %s1884 = ssub.s32 %s9, 2
      // Predicated region
      $region41: #{gated_conv2d.1} parent=39 // pred_check
        %p1885 = pneg %p106
      $region42: #{gated_conv2d.1} parent=39 // pred_check_branch
        %1887 = sbr.rel (%p1885) target = $region44
      $region43: #{gated_conv2d.1} parent=39 // pred_region
        %p1888 = scmp.lt.s32.totalorder %s15, 1
        %s1889 = scalar_select %p1888, %s15, 1
        %s1890 = smul.addr %s1889, 3
        %s1891 = smul.addr %s1890, 8
        %s1892 = scalar_lea.vmem %s3, %s1891
      $region44: #{gated_conv2d.1} parent=39 // pred_fallthru
        _
    $region40: #{gated_conv2d.1} parent=5 // pred_fallthru
      _
  $region6: #{gated_conv2d.1} parent=0 // loop_footer
    %s13 = sadd.s32 1, %s9
  $region7: #{gated_conv2d.1} parent=0 // loop_footer_branch
    %8 = sbr.rel target = $region3
  $region8: #{gated_conv2d.1} parent=0 // loop_exit
    _

</llo_original>
